<compile_context>
chip_gen: v5e
topology: v5e:2x2
jax: 0.10.0
libtpu: 0.0.40
codegen_flags: <defaults>
</compile_context>

<pallas_src>
import jax
import jax.numpy as jnp
from jax import lax
from jax.experimental import pallas as pl
from jax.experimental.pallas import tpu as pltpu

GROUP = 8  # batch rows gathered per store (one f32 vreg of sublanes)


def _round_up(x, m):
    return (x + m - 1) // m * m


def mlp_kernel(ids_ref, emb_ref, w1_ref, b1_ref, w2_ref, b2_ref, o_ref, x_scratch):
    # ids_ref:   (B_pad*S,)        int32, SMEM (scalar-prefetched token ids, row-major)
    # emb_ref:   (V_pad, E_pad)    f32,  VMEM-resident embedding table
    # w1_ref:    (S*E_pad, H_pad)  bf16 (resident),  b1_ref: (1, H_pad) f32
    # w2_ref:    (H_pad, C_pad)    bf16 (resident),  b2_ref: (1, C_pad) f32
    # o_ref:     (block_b, C_pad)  f32 output tile (lane-dense: C padded to 128)
    # x_scratch: (block_b, S*E_pad) f32 gathered + flattened activations
    i = pl.program_id(0)
    block_b = o_ref.shape[0]
    e_pad = emb_ref.shape[1]
    s_len = x_scratch.shape[1] // e_pad
    n_groups = block_b // GROUP

    # Fused embedding gather: rolled loop over 8-row batch groups.  Loads are per-row
    # (3 vld slots/cycle absorb them); stores are one aligned (8, E_pad) block per position.
    def gather_group(gb, carry):
        b0 = pl.multiple_of(gb * GROUP, GROUP)
        id_base = (i * block_b + b0) * s_len
        for s in range(s_len):  # static: S is small (=8)
            rows = [
                emb_ref[pl.ds(ids_ref[id_base + j * s_len + s], 1), :]
                for j in range(GROUP)
            ]
            x_scratch[pl.ds(b0, GROUP), pl.ds(s * e_pad, e_pad)] = jnp.concatenate(rows, axis=0)
        return carry

    lax.fori_loop(0, n_groups, gather_group, 0)

    # Hot path: bf16 MXU operands, f32 accumulation; elementwise math stays f32.
    x = x_scratch[...].astype(jnp.bfloat16)
    h = jnp.dot(x, w1_ref[...], preferred_element_type=jnp.float32) + b1_ref[...]
    h = jnp.maximum(h, 0.0)  # ReLU
    out = jnp.dot(h.astype(jnp.bfloat16), w2_ref[...],
                  preferred_element_type=jnp.float32) + b2_ref[...]
    o_ref[...] = out.astype(o_ref.dtype)


def mlp_classifier_forward(x_ids, emb_table, w1, b1, w2, b2, *, block_b=None):
    """Forward pass matching MLPClassifier.forward.

    x_ids: (B, S) int token ids; emb_table: (V, E) f32
    w1: (S*E, H), b1: (H,), w2: (H, C), b2: (C,)  ->  (B, C) f32 logits
    """
    B, S = x_ids.shape
    V, E = emb_table.shape
    SE, H = w1.shape
    C = w2.shape[1]
    assert SE == S * E, "w1 must have shape (S*E, H)"

    f32, bf16 = jnp.float32, jnp.bfloat16

    # Lane / sublane aligned padded sizes.
    E_pad = _round_up(E, 128)
    H_pad = _round_up(H, 128)
    C_pad = _round_up(C, 128)
    V_pad = _round_up(V, 8)

    # Batch tile: large enough to feed the MXU M dim; prefer >=2 tiles when B allows so the
    # "parallel" axis actually shards across TensorCores on v7x.
    if block_b is None:
        block_b = min(128, _round_up(B, GROUP))
        if B > GROUP and _round_up(B, block_b) == block_b:
            block_b = max(GROUP, _round_up((B + 1) // 2, GROUP))
    block_b = max(GROUP, _round_up(block_b, GROUP))
    B_pad = _round_up(B, block_b)
    num_tiles = B_pad // block_b

    # Clamp ids (no runtime OOB check on VMEM reads) and flatten to 1-D for SMEM.
    ids = jnp.clip(x_ids.astype(jnp.int32), 0, V - 1).reshape(-1)
    ids_p = jnp.zeros((B_pad * S,), jnp.int32).at[: B * S].set(ids)

    # Zero-padded operands (exact: padded rows/logits are sliced off, padded hidden units
    # have zero pre-activation and zero outgoing weights).
    emb_p = jnp.zeros((V_pad, E_pad), f32).at[:V, :E].set(emb_table.astype(f32))
    w1_p = (jnp.zeros((S, E_pad, H_pad), bf16)
            .at[:, :E, :H].set(w1.reshape(S, E, H).astype(bf16))
            .reshape(S * E_pad, H_pad))
    b1_p = jnp.zeros((1, H_pad), f32).at[0, :H].set(b1.astype(f32))
    w2_p = jnp.zeros((H_pad, C_pad), bf16).at[:H, :C].set(w2.astype(bf16))
    b2_p = jnp.zeros((1, C_pad), f32).at[0, :C].set(b2.astype(f32))

    # Explicit VMEM budget: single-buffered residents + scratch + double-buffered output tile.
    def nbytes(a):
        return int(a.size) * a.dtype.itemsize
    resident = nbytes(emb_p) + nbytes(w1_p) + nbytes(b1_p) + nbytes(w2_p) + nbytes(b2_p)
    scratch_bytes = block_b * S * E_pad * 4
    out_bytes = 2 * block_b * C_pad * 4
    vmem_limit = int(min(max(resident + scratch_bytes + out_bytes + (4 << 20), 32 << 20),
                         100 << 20))

    flops = 2 * B_pad * (S * E_pad * H_pad + H_pad * C_pad)
    bytes_accessed = (ids_p.size * 4 + resident + B_pad * C_pad * 4)

    # Constant index_maps + Buffered(1): fetched once, single VMEM buffer, resident for all tiles.
    def const_spec(shape):
        return pl.BlockSpec(shape, lambda i, ids: (0, 0), pipeline_mode=pl.Buffered(1))

    grid_spec = pltpu.PrefetchScalarGridSpec(
        num_scalar_prefetch=1,                # ids -> SMEM, readable as scalars in the kernel
        grid=(num_tiles,),                    # grid over batch tiles
        in_specs=[
            const_spec((V_pad, E_pad)),       # embedding table
            const_spec((S * E_pad, H_pad)),   # W1
            const_spec((1, H_pad)),           # b1
            const_spec((H_pad, C_pad)),       # W2
            const_spec((1, C_pad)),           # b2
        ],
        out_specs=pl.BlockSpec((block_b, C_pad), lambda i, ids: (i, 0)),
        scratch_shapes=[pltpu.VMEM((block_b, S * E_pad), f32)],
    )

    out = pl.pallas_call(
        mlp_kernel,
        out_shape=jax.ShapeDtypeStruct((B_pad, C_pad), f32),
        grid_spec=grid_spec,
        compiler_params=pltpu.CompilerParams(
            dimension_semantics=("parallel",),   # batch tiles are independent (v7x megacore)
            vmem_limit_bytes=vmem_limit,
        ),
        cost_estimate=pl.CostEstimate(
            flops=flops, transcendentals=0, bytes_accessed=bytes_accessed),
    )(ids_p, emb_p, w1_p, b1_p, w2_p, b2_p)

    return out[:B, :C]


if __name__ == "__main__":
    # Small deterministic config consistent with MLPClassifier:
    #   input_dim (seq len) S = 8, embedding_dim E = 128, hidden_dim H = 32,
    #   vocab_size V = 100, num_classes C = 2, batch B = 2.
    B, S, E, H, C, V = 2, 8, 128, 32, 2, 100

    key = jax.random.PRNGKey(0)
    k_emb, k_w1, k_b1, k_w2, k_b2, k_x = jax.random.split(key, 6)

    emb_table = jax.random.normal(k_emb, (V, E), dtype=jnp.float32)       # nn.Embedding ~ N(0,1)
    lim1 = 1.0 / jnp.sqrt(S * E)
    w1 = jax.random.uniform(k_w1, (S * E, H), minval=-lim1, maxval=lim1, dtype=jnp.float32)
    b1 = jax.random.uniform(k_b1, (H,), minval=-lim1, maxval=lim1, dtype=jnp.float32)
    lim2 = 1.0 / jnp.sqrt(H)
    w2 = jax.random.uniform(k_w2, (H, C), minval=-lim2, maxval=lim2, dtype=jnp.float32)
    b2 = jax.random.uniform(k_b2, (C,), minval=-lim2, maxval=lim2, dtype=jnp.float32)

    x_ids = jax.random.randint(k_x, (B, S), minval=0, maxval=V, dtype=jnp.int32)

    logits = mlp_classifier_forward(x_ids, emb_table, w1, b1, w2, b2)
    logits = jax.block_until_ready(logits)
    assert logits.shape == (B, C)

    # Reference matching the kernel's numerics (bf16 MXU operands, f32 accumulation).
    x_flat = jnp.take(emb_table, x_ids, axis=0).reshape(B, S * E)
    h_ref = jnp.maximum(
        jnp.dot(x_flat.astype(jnp.bfloat16), w1.astype(jnp.bfloat16),
                preferred_element_type=jnp.float32) + b1, 0.0)
    ref_bf16 = jnp.dot(h_ref.astype(jnp.bfloat16), w2.astype(jnp.bfloat16),
                       preferred_element_type=jnp.float32) + b2
    # Full-f32 reference (exact semantics of the PyTorch module) as a sanity bound.
    ref_f32 = jnp.maximum(x_flat @ w1 + b1, 0.0) @ w2 + b2

    assert jnp.allclose(logits, ref_bf16, atol=2e-3, rtol=2e-3)
    assert jnp.allclose(logits, ref_f32, atol=5e-2, rtol=5e-2)

    print("KERNEL_OK")
</pallas_src>

<mosaic_0001>
module attributes {stable_mosaic.version = 11 : i64} {
  func.func @mlp_kernel(%arg0: i32, %arg1: memref<64xi32, #tpu.memory_space<smem>>, %arg2: memref<104x128xf32, #tpu.memory_space<vmem>>, %arg3: memref<1024x128xbf16, #tpu.memory_space<vmem>>, %arg4: memref<1x128xf32, #tpu.memory_space<vmem>>, %arg5: memref<128x128xbf16, #tpu.memory_space<vmem>>, %arg6: memref<1x128xf32, #tpu.memory_space<vmem>>, %arg7: memref<8x128xf32, #tpu.memory_space<vmem>>, %arg8: memref<8x1024xf32, #tpu.memory_space<vmem>>) attributes {dimension_semantics = [#tpu.dimension_semantics<parallel>], iteration_bounds = array<i64: 1>, scalar_prefetch = 1 : i64, scratch_operands = 1 : i64, tpu.core_type = #tpu.core_type<tc>, window_params = [{pipeline_mode = #tpu.pipeline_mode<synchronous>, transform_indices = @transform_0, window_bounds = array<i64: 104, 128>}, {pipeline_mode = #tpu.pipeline_mode<synchronous>, transform_indices = @transform_1, window_bounds = array<i64: 1024, 128>}, {pipeline_mode = #tpu.pipeline_mode<synchronous>, transform_indices = @transform_2, window_bounds = array<i64: 1, 128>}, {pipeline_mode = #tpu.pipeline_mode<synchronous>, transform_indices = @transform_3, window_bounds = array<i64: 128, 128>}, {pipeline_mode = #tpu.pipeline_mode<synchronous>, transform_indices = @transform_4, window_bounds = array<i64: 1, 128>}, {transform_indices = @transform_5, window_bounds = array<i64: 8, 128>}]} {
    %c0_i32 = arith.constant 0 : i32
    %c8_i32 = arith.constant 8 : i32
    %0 = arith.muli %c0_i32, %c8_i32 : i32
    %1 = tpu.assume_multiple %0, 8 : i32
    %c8_i32_0 = arith.constant 8 : i32
    %2 = arith.muli %arg0, %c8_i32_0 : i32
    %3 = arith.addi %2, %1 : i32
    %c8_i32_1 = arith.constant 8 : i32
    %4 = arith.muli %3, %c8_i32_1 : i32
    %c0_i32_2 = arith.constant 0 : i32
    %5 = arith.addi %4, %c0_i32_2 : i32
    %c0_i32_3 = arith.constant 0 : i32
    %6 = arith.addi %5, %c0_i32_3 : i32
    %7 = arith.index_cast %6 : i32 to index
    %8 = memref.load %arg1[%7] : memref<64xi32, #tpu.memory_space<smem>>
    %9 = arith.index_cast %8 : i32 to index
    %c0 = arith.constant 0 : index
    %10 = vector.load %arg2[%9, %c0] : memref<104x128xf32, #tpu.memory_space<vmem>>, vector<1x128xf32>
    %c8_i32_4 = arith.constant 8 : i32
    %11 = arith.addi %4, %c8_i32_4 : i32
    %c0_i32_5 = arith.constant 0 : i32
    %12 = arith.addi %11, %c0_i32_5 : i32
    %13 = arith.index_cast %12 : i32 to index
    %14 = memref.load %arg1[%13] : memref<64xi32, #tpu.memory_space<smem>>
    %15 = arith.index_cast %14 : i32 to index
    %c0_6 = arith.constant 0 : index
    %16 = vector.load %arg2[%15, %c0_6] : memref<104x128xf32, #tpu.memory_space<vmem>>, vector<1x128xf32>
    %c16_i32 = arith.constant 16 : i32
    %17 = arith.addi %4, %c16_i32 : i32
    %c0_i32_7 = arith.constant 0 : i32
    %18 = arith.addi %17, %c0_i32_7 : i32
    %19 = arith.index_cast %18 : i32 to index
    %20 = memref.load %arg1[%19] : memref<64xi32, #tpu.memory_space<smem>>
    %21 = arith.index_cast %20 : i32 to index
    %c0_8 = arith.constant 0 : index
    %22 = vector.load %arg2[%21, %c0_8] : memref<104x128xf32, #tpu.memory_space<vmem>>, vector<1x128xf32>
    %c24_i32 = arith.constant 24 : i32
    %23 = arith.addi %4, %c24_i32 : i32
    %c0_i32_9 = arith.constant 0 : i32
    %24 = arith.addi %23, %c0_i32_9 : i32
    %25 = arith.index_cast %24 : i32 to index
    %26 = memref.load %arg1[%25] : memref<64xi32, #tpu.memory_space<smem>>
    %27 = arith.index_cast %26 : i32 to index
    %c0_10 = arith.constant 0 : index
    %28 = vector.load %arg2[%27, %c0_10] : memref<104x128xf32, #tpu.memory_space<vmem>>, vector<1x128xf32>
    %c32_i32 = arith.constant 32 : i32
    %29 = arith.addi %4, %c32_i32 : i32
    %c0_i32_11 = arith.constant 0 : i32
    %30 = arith.addi %29, %c0_i32_11 : i32
    %31 = arith.index_cast %30 : i32 to index
    %32 = memref.load %arg1[%31] : memref<64xi32, #tpu.memory_space<smem>>
    %33 = arith.index_cast %32 : i32 to index
    %c0_12 = arith.constant 0 : index
    %34 = vector.load %arg2[%33, %c0_12] : memref<104x128xf32, #tpu.memory_space<vmem>>, vector<1x128xf32>
    %c40_i32 = arith.constant 40 : i32
    %35 = arith.addi %4, %c40_i32 : i32
    %c0_i32_13 = arith.constant 0 : i32
    %36 = arith.addi %35, %c0_i32_13 : i32
    %37 = arith.index_cast %36 : i32 to index
    %38 = memref.load %arg1[%37] : memref<64xi32, #tpu.memory_space<smem>>
    %39 = arith.index_cast %38 : i32 to index
    %c0_14 = arith.constant 0 : index
    %40 = vector.load %arg2[%39, %c0_14] : memref<104x128xf32, #tpu.memory_space<vmem>>, vector<1x128xf32>
    %c48_i32 = arith.constant 48 : i32
    %41 = arith.addi %4, %c48_i32 : i32
    %c0_i32_15 = arith.constant 0 : i32
    %42 = arith.addi %41, %c0_i32_15 : i32
    %43 = arith.index_cast %42 : i32 to index
    %44 = memref.load %arg1[%43] : memref<64xi32, #tpu.memory_space<smem>>
    %45 = arith.index_cast %44 : i32 to index
    %c0_16 = arith.constant 0 : index
    %46 = vector.load %arg2[%45, %c0_16] : memref<104x128xf32, #tpu.memory_space<vmem>>, vector<1x128xf32>
    %c56_i32 = arith.constant 56 : i32
    %47 = arith.addi %4, %c56_i32 : i32
    %c0_i32_17 = arith.constant 0 : i32
    %48 = arith.addi %47, %c0_i32_17 : i32
    %49 = arith.index_cast %48 : i32 to index
    %50 = memref.load %arg1[%49] : memref<64xi32, #tpu.memory_space<smem>>
    %51 = arith.index_cast %50 : i32 to index
    %c0_18 = arith.constant 0 : index
    %52 = vector.load %arg2[%51, %c0_18] : memref<104x128xf32, #tpu.memory_space<vmem>>, vector<1x128xf32>
    %53 = tpu.concatenate %10, %16, %22, %28, %34, %40, %46, %52 in 0 : vector<1x128xf32>, vector<1x128xf32>, vector<1x128xf32>, vector<1x128xf32>, vector<1x128xf32>, vector<1x128xf32>, vector<1x128xf32>, vector<1x128xf32> -> vector<8x128xf32>
    %54 = arith.index_cast %1 : i32 to index
    %c0_19 = arith.constant 0 : index
    %55 = vector.load %arg8[%54, %c0_19] : memref<8x1024xf32, #tpu.memory_space<vmem>>, vector<8x128xf32>
    tpu.vector_store %arg8[%54, %c0_19], %53 {strides = array<i32>} : memref<8x1024xf32, #tpu.memory_space<vmem>>, vector<8x128xf32>,
    %c0_i32_20 = arith.constant 0 : i32
    %56 = arith.addi %4, %c0_i32_20 : i32
    %c1_i32 = arith.constant 1 : i32
    %57 = arith.addi %56, %c1_i32 : i32
    %58 = arith.index_cast %57 : i32 to index
    %59 = memref.load %arg1[%58] : memref<64xi32, #tpu.memory_space<smem>>
    %60 = arith.index_cast %59 : i32 to index
    %c0_21 = arith.constant 0 : index
    %61 = vector.load %arg2[%60, %c0_21] : memref<104x128xf32, #tpu.memory_space<vmem>>, vector<1x128xf32>
    %c8_i32_22 = arith.constant 8 : i32
    %62 = arith.addi %4, %c8_i32_22 : i32
    %c1_i32_23 = arith.constant 1 : i32
    %63 = arith.addi %62, %c1_i32_23 : i32
    %64 = arith.index_cast %63 : i32 to index
    %65 = memref.load %arg1[%64] : memref<64xi32, #tpu.memory_space<smem>>
    %66 = arith.index_cast %65 : i32 to index
    %c0_24 = arith.constant 0 : index
    %67 = vector.load %arg2[%66, %c0_24] : memref<104x128xf32, #tpu.memory_space<vmem>>, vector<1x128xf32>
    %c16_i32_25 = arith.constant 16 : i32
    %68 = arith.addi %4, %c16_i32_25 : i32
    %c1_i32_26 = arith.constant 1 : i32
    %69 = arith.addi %68, %c1_i32_26 : i32
    %70 = arith.index_cast %69 : i32 to index
    %71 = memref.load %arg1[%70] : memref<64xi32, #tpu.memory_space<smem>>
    %72 = arith.index_cast %71 : i32 to index
    %c0_27 = arith.constant 0 : index
    %73 = vector.load %arg2[%72, %c0_27] : memref<104x128xf32, #tpu.memory_space<vmem>>, vector<1x128xf32>
    %c24_i32_28 = arith.constant 24 : i32
    %74 = arith.addi %4, %c24_i32_28 : i32
    %c1_i32_29 = arith.constant 1 : i32
    %75 = arith.addi %74, %c1_i32_29 : i32
    %76 = arith.index_cast %75 : i32 to index
    %77 = memref.load %arg1[%76] : memref<64xi32, #tpu.memory_space<smem>>
    %78 = arith.index_cast %77 : i32 to index
    %c0_30 = arith.constant 0 : index
    %79 = vector.load %arg2[%78, %c0_30] : memref<104x128xf32, #tpu.memory_space<vmem>>, vector<1x128xf32>
    %c32_i32_31 = arith.constant 32 : i32
    %80 = arith.addi %4, %c32_i32_31 : i32
    %c1_i32_32 = arith.constant 1 : i32
    %81 = arith.addi %80, %c1_i32_32 : i32
    %82 = arith.index_cast %81 : i32 to index
    %83 = memref.load %arg1[%82] : memref<64xi32, #tpu.memory_space<smem>>
    %84 = arith.index_cast %83 : i32 to index
    %c0_33 = arith.constant 0 : index
    %85 = vector.load %arg2[%84, %c0_33] : memref<104x128xf32, #tpu.memory_space<vmem>>, vector<1x128xf32>
    %c40_i32_34 = arith.constant 40 : i32
    %86 = arith.addi %4, %c40_i32_34 : i32
    %c1_i32_35 = arith.constant 1 : i32
    %87 = arith.addi %86, %c1_i32_35 : i32
    %88 = arith.index_cast %87 : i32 to index
    %89 = memref.load %arg1[%88] : memref<64xi32, #tpu.memory_space<smem>>
    %90 = arith.index_cast %89 : i32 to index
    %c0_36 = arith.constant 0 : index
    %91 = vector.load %arg2[%90, %c0_36] : memref<104x128xf32, #tpu.memory_space<vmem>>, vector<1x128xf32>
    %c48_i32_37 = arith.constant 48 : i32
    %92 = arith.addi %4, %c48_i32_37 : i32
    %c1_i32_38 = arith.constant 1 : i32
    %93 = arith.addi %92, %c1_i32_38 : i32
    %94 = arith.index_cast %93 : i32 to index
    %95 = memref.load %arg1[%94] : memref<64xi32, #tpu.memory_space<smem>>
    %96 = arith.index_cast %95 : i32 to index
    %c0_39 = arith.constant 0 : index
    %97 = vector.load %arg2[%96, %c0_39] : memref<104x128xf32, #tpu.memory_space<vmem>>, vector<1x128xf32>
    %c56_i32_40 = arith.constant 56 : i32
    %98 = arith.addi %4, %c56_i32_40 : i32
    %c1_i32_41 = arith.constant 1 : i32
    %99 = arith.addi %98, %c1_i32_41 : i32
    %100 = arith.index_cast %99 : i32 to index
    %101 = memref.load %arg1[%100] : memref<64xi32, #tpu.memory_space<smem>>
    %102 = arith.index_cast %101 : i32 to index
    %c0_42 = arith.constant 0 : index
    %103 = vector.load %arg2[%102, %c0_42] : memref<104x128xf32, #tpu.memory_space<vmem>>, vector<1x128xf32>
    %104 = tpu.concatenate %61, %67, %73, %79, %85, %91, %97, %103 in 0 : vector<1x128xf32>, vector<1x128xf32>, vector<1x128xf32>, vector<1x128xf32>, vector<1x128xf32>, vector<1x128xf32>, vector<1x128xf32>, vector<1x128xf32> -> vector<8x128xf32>
    %105 = arith.index_cast %1 : i32 to index
    %c128 = arith.constant 128 : index
    %106 = vector.load %arg8[%105, %c128] : memref<8x1024xf32, #tpu.memory_space<vmem>>, vector<8x128xf32>
    tpu.vector_store %arg8[%105, %c128], %104 {strides = array<i32>} : memref<8x1024xf32, #tpu.memory_space<vmem>>, vector<8x128xf32>,
    %c0_i32_43 = arith.constant 0 : i32
    %107 = arith.addi %4, %c0_i32_43 : i32
    %c2_i32 = arith.constant 2 : i32
    %108 = arith.addi %107, %c2_i32 : i32
    %109 = arith.index_cast %108 : i32 to index
    %110 = memref.load %arg1[%109] : memref<64xi32, #tpu.memory_space<smem>>
    %111 = arith.index_cast %110 : i32 to index
    %c0_44 = arith.constant 0 : index
    %112 = vector.load %arg2[%111, %c0_44] : memref<104x128xf32, #tpu.memory_space<vmem>>, vector<1x128xf32>
    %c8_i32_45 = arith.constant 8 : i32
    %113 = arith.addi %4, %c8_i32_45 : i32
    %c2_i32_46 = arith.constant 2 : i32
    %114 = arith.addi %113, %c2_i32_46 : i32
    %115 = arith.index_cast %114 : i32 to index
    %116 = memref.load %arg1[%115] : memref<64xi32, #tpu.memory_space<smem>>
    %117 = arith.index_cast %116 : i32 to index
    %c0_47 = arith.constant 0 : index
    %118 = vector.load %arg2[%117, %c0_47] : memref<104x128xf32, #tpu.memory_space<vmem>>, vector<1x128xf32>
    %c16_i32_48 = arith.constant 16 : i32
    %119 = arith.addi %4, %c16_i32_48 : i32
    %c2_i32_49 = arith.constant 2 : i32
    %120 = arith.addi %119, %c2_i32_49 : i32
    %121 = arith.index_cast %120 : i32 to index
    %122 = memref.load %arg1[%121] : memref<64xi32, #tpu.memory_space<smem>>
    %123 = arith.index_cast %122 : i32 to index
    %c0_50 = arith.constant 0 : index
    %124 = vector.load %arg2[%123, %c0_50] : memref<104x128xf32, #tpu.memory_space<vmem>>, vector<1x128xf32>
    %c24_i32_51 = arith.constant 24 : i32
    %125 = arith.addi %4, %c24_i32_51 : i32
    %c2_i32_52 = arith.constant 2 : i32
    %126 = arith.addi %125, %c2_i32_52 : i32
    %127 = arith.index_cast %126 : i32 to index
    %128 = memref.load %arg1[%127] : memref<64xi32, #tpu.memory_space<smem>>
    %129 = arith.index_cast %128 : i32 to index
    %c0_53 = arith.constant 0 : index
    %130 = vector.load %arg2[%129, %c0_53] : memref<104x128xf32, #tpu.memory_space<vmem>>, vector<1x128xf32>
    %c32_i32_54 = arith.constant 32 : i32
    %131 = arith.addi %4, %c32_i32_54 : i32
    %c2_i32_55 = arith.constant 2 : i32
    %132 = arith.addi %131, %c2_i32_55 : i32
    %133 = arith.index_cast %132 : i32 to index
    %134 = memref.load %arg1[%133] : memref<64xi32, #tpu.memory_space<smem>>
    %135 = arith.index_cast %134 : i32 to index
    %c0_56 = arith.constant 0 : index
    %136 = vector.load %arg2[%135, %c0_56] : memref<104x128xf32, #tpu.memory_space<vmem>>, vector<1x128xf32>
    %c40_i32_57 = arith.constant 40 : i32
    %137 = arith.addi %4, %c40_i32_57 : i32
    %c2_i32_58 = arith.constant 2 : i32
    %138 = arith.addi %137, %c2_i32_58 : i32
    %139 = arith.index_cast %138 : i32 to index
    %140 = memref.load %arg1[%139] : memref<64xi32, #tpu.memory_space<smem>>
    %141 = arith.index_cast %140 : i32 to index
    %c0_59 = arith.constant 0 : index
    %142 = vector.load %arg2[%141, %c0_59] : memref<104x128xf32, #tpu.memory_space<vmem>>, vector<1x128xf32>
    %c48_i32_60 = arith.constant 48 : i32
    %143 = arith.addi %4, %c48_i32_60 : i32
    %c2_i32_61 = arith.constant 2 : i32
    %144 = arith.addi %143, %c2_i32_61 : i32
    %145 = arith.index_cast %144 : i32 to index
    %146 = memref.load %arg1[%145] : memref<64xi32, #tpu.memory_space<smem>>
    %147 = arith.index_cast %146 : i32 to index
    %c0_62 = arith.constant 0 : index
    %148 = vector.load %arg2[%147, %c0_62] : memref<104x128xf32, #tpu.memory_space<vmem>>, vector<1x128xf32>
    %c56_i32_63 = arith.constant 56 : i32
    %149 = arith.addi %4, %c56_i32_63 : i32
    %c2_i32_64 = arith.constant 2 : i32
    %150 = arith.addi %149, %c2_i32_64 : i32
    %151 = arith.index_cast %150 : i32 to index
    %152 = memref.load %arg1[%151] : memref<64xi32, #tpu.memory_space<smem>>
    %153 = arith.index_cast %152 : i32 to index
    %c0_65 = arith.constant 0 : index
    %154 = vector.load %arg2[%153, %c0_65] : memref<104x128xf32, #tpu.memory_space<vmem>>, vector<1x128xf32>
    %155 = tpu.concatenate %112, %118, %124, %130, %136, %142, %148, %154 in 0 : vector<1x128xf32>, vector<1x128xf32>, vector<1x128xf32>, vector<1x128xf32>, vector<1x128xf32>, vector<1x128xf32>, vector<1x128xf32>, vector<1x128xf32> -> vector<8x128xf32>
    %156 = arith.index_cast %1 : i32 to index
    %c256 = arith.constant 256 : index
    %157 = vector.load %arg8[%156, %c256] : memref<8x1024xf32, #tpu.memory_space<vmem>>, vector<8x128xf32>
    tpu.vector_store %arg8[%156, %c256], %155 {strides = array<i32>} : memref<8x1024xf32, #tpu.memory_space<vmem>>, vector<8x128xf32>,
    %c0_i32_66 = arith.constant 0 : i32
    %158 = arith.addi %4, %c0_i32_66 : i32
    %c3_i32 = arith.constant 3 : i32
    %159 = arith.addi %158, %c3_i32 : i32
    %160 = arith.index_cast %159 : i32 to index
    %161 = memref.load %arg1[%160] : memref<64xi32, #tpu.memory_space<smem>>
    %162 = arith.index_cast %161 : i32 to index
    %c0_67 = arith.constant 0 : index
    %163 = vector.load %arg2[%162, %c0_67] : memref<104x128xf32, #tpu.memory_space<vmem>>, vector<1x128xf32>
    %c8_i32_68 = arith.constant 8 : i32
    %164 = arith.addi %4, %c8_i32_68 : i32
    %c3_i32_69 = arith.constant 3 : i32
    %165 = arith.addi %164, %c3_i32_69 : i32
    %166 = arith.index_cast %165 : i32 to index
    %167 = memref.load %arg1[%166] : memref<64xi32, #tpu.memory_space<smem>>
    %168 = arith.index_cast %167 : i32 to index
    %c0_70 = arith.constant 0 : index
    %169 = vector.load %arg2[%168, %c0_70] : memref<104x128xf32, #tpu.memory_space<vmem>>, vector<1x128xf32>
    %c16_i32_71 = arith.constant 16 : i32
    %170 = arith.addi %4, %c16_i32_71 : i32
    %c3_i32_72 = arith.constant 3 : i32
    %171 = arith.addi %170, %c3_i32_72 : i32
    %172 = arith.index_cast %171 : i32 to index
    %173 = memref.load %arg1[%172] : memref<64xi32, #tpu.memory_space<smem>>
    %174 = arith.index_cast %173 : i32 to index
    %c0_73 = arith.constant 0 : index
    %175 = vector.load %arg2[%174, %c0_73] : memref<104x128xf32, #tpu.memory_space<vmem>>, vector<1x128xf32>
    %c24_i32_74 = arith.constant 24 : i32
    %176 = arith.addi %4, %c24_i32_74 : i32
    %c3_i32_75 = arith.constant 3 : i32
    %177 = arith.addi %176, %c3_i32_75 : i32
    %178 = arith.index_cast %177 : i32 to index
    %179 = memref.load %arg1[%178] : memref<64xi32, #tpu.memory_space<smem>>
    %180 = arith.index_cast %179 : i32 to index
    %c0_76 = arith.constant 0 : index
    %181 = vector.load %arg2[%180, %c0_76] : memref<104x128xf32, #tpu.memory_space<vmem>>, vector<1x128xf32>
    %c32_i32_77 = arith.constant 32 : i32
    %182 = arith.addi %4, %c32_i32_77 : i32
    %c3_i32_78 = arith.constant 3 : i32
    %183 = arith.addi %182, %c3_i32_78 : i32
    %184 = arith.index_cast %183 : i32 to index
    %185 = memref.load %arg1[%184] : memref<64xi32, #tpu.memory_space<smem>>
    %186 = arith.index_cast %185 : i32 to index
    %c0_79 = arith.constant 0 : index
    %187 = vector.load %arg2[%186, %c0_79] : memref<104x128xf32, #tpu.memory_space<vmem>>, vector<1x128xf32>
    %c40_i32_80 = arith.constant 40 : i32
    %188 = arith.addi %4, %c40_i32_80 : i32
    %c3_i32_81 = arith.constant 3 : i32
    %189 = arith.addi %188, %c3_i32_81 : i32
    %190 = arith.index_cast %189 : i32 to index
    %191 = memref.load %arg1[%190] : memref<64xi32, #tpu.memory_space<smem>>
    %192 = arith.index_cast %191 : i32 to index
    %c0_82 = arith.constant 0 : index
    %193 = vector.load %arg2[%192, %c0_82] : memref<104x128xf32, #tpu.memory_space<vmem>>, vector<1x128xf32>
    %c48_i32_83 = arith.constant 48 : i32
    %194 = arith.addi %4, %c48_i32_83 : i32
    %c3_i32_84 = arith.constant 3 : i32
    %195 = arith.addi %194, %c3_i32_84 : i32
    %196 = arith.index_cast %195 : i32 to index
    %197 = memref.load %arg1[%196] : memref<64xi32, #tpu.memory_space<smem>>
    %198 = arith.index_cast %197 : i32 to index
    %c0_85 = arith.constant 0 : index
    %199 = vector.load %arg2[%198, %c0_85] : memref<104x128xf32, #tpu.memory_space<vmem>>, vector<1x128xf32>
    %c56_i32_86 = arith.constant 56 : i32
    %200 = arith.addi %4, %c56_i32_86 : i32
    %c3_i32_87 = arith.constant 3 : i32
    %201 = arith.addi %200, %c3_i32_87 : i32
    %202 = arith.index_cast %201 : i32 to index
    %203 = memref.load %arg1[%202] : memref<64xi32, #tpu.memory_space<smem>>
    %204 = arith.index_cast %203 : i32 to index
    %c0_88 = arith.constant 0 : index
    %205 = vector.load %arg2[%204, %c0_88] : memref<104x128xf32, #tpu.memory_space<vmem>>, vector<1x128xf32>
    %206 = tpu.concatenate %163, %169, %175, %181, %187, %193, %199, %205 in 0 : vector<1x128xf32>, vector<1x128xf32>, vector<1x128xf32>, vector<1x128xf32>, vector<1x128xf32>, vector<1x128xf32>, vector<1x128xf32>, vector<1x128xf32> -> vector<8x128xf32>
    %207 = arith.index_cast %1 : i32 to index
    %c384 = arith.constant 384 : index
    %208 = vector.load %arg8[%207, %c384] : memref<8x1024xf32, #tpu.memory_space<vmem>>, vector<8x128xf32>
    tpu.vector_store %arg8[%207, %c384], %206 {strides = array<i32>} : memref<8x1024xf32, #tpu.memory_space<vmem>>, vector<8x128xf32>,
    %c0_i32_89 = arith.constant 0 : i32
    %209 = arith.addi %4, %c0_i32_89 : i32
    %c4_i32 = arith.constant 4 : i32
    %210 = arith.addi %209, %c4_i32 : i32
    %211 = arith.index_cast %210 : i32 to index
    %212 = memref.load %arg1[%211] : memref<64xi32, #tpu.memory_space<smem>>
    %213 = arith.index_cast %212 : i32 to index
    %c0_90 = arith.constant 0 : index
    %214 = vector.load %arg2[%213, %c0_90] : memref<104x128xf32, #tpu.memory_space<vmem>>, vector<1x128xf32>
    %c8_i32_91 = arith.constant 8 : i32
    %215 = arith.addi %4, %c8_i32_91 : i32
    %c4_i32_92 = arith.constant 4 : i32
    %216 = arith.addi %215, %c4_i32_92 : i32
    %217 = arith.index_cast %216 : i32 to index
    %218 = memref.load %arg1[%217] : memref<64xi32, #tpu.memory_space<smem>>
    %219 = arith.index_cast %218 : i32 to index
    %c0_93 = arith.constant 0 : index
    %220 = vector.load %arg2[%219, %c0_93] : memref<104x128xf32, #tpu.memory_space<vmem>>, vector<1x128xf32>
    %c16_i32_94 = arith.constant 16 : i32
    %221 = arith.addi %4, %c16_i32_94 : i32
    %c4_i32_95 = arith.constant 4 : i32
    %222 = arith.addi %221, %c4_i32_95 : i32
    %223 = arith.index_cast %222 : i32 to index
    %224 = memref.load %arg1[%223] : memref<64xi32, #tpu.memory_space<smem>>
    %225 = arith.index_cast %224 : i32 to index
    %c0_96 = arith.constant 0 : index
    %226 = vector.load %arg2[%225, %c0_96] : memref<104x128xf32, #tpu.memory_space<vmem>>, vector<1x128xf32>
    %c24_i32_97 = arith.constant 24 : i32
    %227 = arith.addi %4, %c24_i32_97 : i32
    %c4_i32_98 = arith.constant 4 : i32
    %228 = arith.addi %227, %c4_i32_98 : i32
    %229 = arith.index_cast %228 : i32 to index
    %230 = memref.load %arg1[%229] : memref<64xi32, #tpu.memory_space<smem>>
    %231 = arith.index_cast %230 : i32 to index
    %c0_99 = arith.constant 0 : index
    %232 = vector.load %arg2[%231, %c0_99] : memref<104x128xf32, #tpu.memory_space<vmem>>, vector<1x128xf32>
    %c32_i32_100 = arith.constant 32 : i32
    %233 = arith.addi %4, %c32_i32_100 : i32
    %c4_i32_101 = arith.constant 4 : i32
    %234 = arith.addi %233, %c4_i32_101 : i32
    %235 = arith.index_cast %234 : i32 to index
    %236 = memref.load %arg1[%235] : memref<64xi32, #tpu.memory_space<smem>>
    %237 = arith.index_cast %236 : i32 to index
    %c0_102 = arith.constant 0 : index
    %238 = vector.load %arg2[%237, %c0_102] : memref<104x128xf32, #tpu.memory_space<vmem>>, vector<1x128xf32>
    %c40_i32_103 = arith.constant 40 : i32
    %239 = arith.addi %4, %c40_i32_103 : i32
    %c4_i32_104 = arith.constant 4 : i32
    %240 = arith.addi %239, %c4_i32_104 : i32
    %241 = arith.index_cast %240 : i32 to index
    %242 = memref.load %arg1[%241] : memref<64xi32, #tpu.memory_space<smem>>
    %243 = arith.index_cast %242 : i32 to index
    %c0_105 = arith.constant 0 : index
    %244 = vector.load %arg2[%243, %c0_105] : memref<104x128xf32, #tpu.memory_space<vmem>>, vector<1x128xf32>
    %c48_i32_106 = arith.constant 48 : i32
    %245 = arith.addi %4, %c48_i32_106 : i32
    %c4_i32_107 = arith.constant 4 : i32
    %246 = arith.addi %245, %c4_i32_107 : i32
    %247 = arith.index_cast %246 : i32 to index
    %248 = memref.load %arg1[%247] : memref<64xi32, #tpu.memory_space<smem>>
    %249 = arith.index_cast %248 : i32 to index
    %c0_108 = arith.constant 0 : index
    %250 = vector.load %arg2[%249, %c0_108] : memref<104x128xf32, #tpu.memory_space<vmem>>, vector<1x128xf32>
    %c56_i32_109 = arith.constant 56 : i32
    %251 = arith.addi %4, %c56_i32_109 : i32
    %c4_i32_110 = arith.constant 4 : i32
    %252 = arith.addi %251, %c4_i32_110 : i32
    %253 = arith.index_cast %252 : i32 to index
    %254 = memref.load %arg1[%253] : memref<64xi32, #tpu.memory_space<smem>>
    %255 = arith.index_cast %254 : i32 to index
    %c0_111 = arith.constant 0 : index
    %256 = vector.load %arg2[%255, %c0_111] : memref<104x128xf32, #tpu.memory_space<vmem>>, vector<1x128xf32>
    %257 = tpu.concatenate %214, %220, %226, %232, %238, %244, %250, %256 in 0 : vector<1x128xf32>, vector<1x128xf32>, vector<1x128xf32>, vector<1x128xf32>, vector<1x128xf32>, vector<1x128xf32>, vector<1x128xf32>, vector<1x128xf32> -> vector<8x128xf32>
    %258 = arith.index_cast %1 : i32 to index
    %c512 = arith.constant 512 : index
    %259 = vector.load %arg8[%258, %c512] : memref<8x1024xf32, #tpu.memory_space<vmem>>, vector<8x128xf32>
    tpu.vector_store %arg8[%258, %c512], %257 {strides = array<i32>} : memref<8x1024xf32, #tpu.memory_space<vmem>>, vector<8x128xf32>,
    %c0_i32_112 = arith.constant 0 : i32
    %260 = arith.addi %4, %c0_i32_112 : i32
    %c5_i32 = arith.constant 5 : i32
    %261 = arith.addi %260, %c5_i32 : i32
    %262 = arith.index_cast %261 : i32 to index
    %263 = memref.load %arg1[%262] : memref<64xi32, #tpu.memory_space<smem>>
    %264 = arith.index_cast %263 : i32 to index
    %c0_113 = arith.constant 0 : index
    %265 = vector.load %arg2[%264, %c0_113] : memref<104x128xf32, #tpu.memory_space<vmem>>, vector<1x128xf32>
    %c8_i32_114 = arith.constant 8 : i32
    %266 = arith.addi %4, %c8_i32_114 : i32
    %c5_i32_115 = arith.constant 5 : i32
    %267 = arith.addi %266, %c5_i32_115 : i32
    %268 = arith.index_cast %267 : i32 to index
    %269 = memref.load %arg1[%268] : memref<64xi32, #tpu.memory_space<smem>>
    %270 = arith.index_cast %269 : i32 to index
    %c0_116 = arith.constant 0 : index
    %271 = vector.load %arg2[%270, %c0_116] : memref<104x128xf32, #tpu.memory_space<vmem>>, vector<1x128xf32>
    %c16_i32_117 = arith.constant 16 : i32
    %272 = arith.addi %4, %c16_i32_117 : i32
    %c5_i32_118 = arith.constant 5 : i32
    %273 = arith.addi %272, %c5_i32_118 : i32
    %274 = arith.index_cast %273 : i32 to index
    %275 = memref.load %arg1[%274] : memref<64xi32, #tpu.memory_space<smem>>
    %276 = arith.index_cast %275 : i32 to index
    %c0_119 = arith.constant 0 : index
    %277 = vector.load %arg2[%276, %c0_119] : memref<104x128xf32, #tpu.memory_space<vmem>>, vector<1x128xf32>
    %c24_i32_120 = arith.constant 24 : i32
    %278 = arith.addi %4, %c24_i32_120 : i32
    %c5_i32_121 = arith.constant 5 : i32
    %279 = arith.addi %278, %c5_i32_121 : i32
    %280 = arith.index_cast %279 : i32 to index
    %281 = memref.load %arg1[%280] : memref<64xi32, #tpu.memory_space<smem>>
    %282 = arith.index_cast %281 : i32 to index
    %c0_122 = arith.constant 0 : index
    %283 = vector.load %arg2[%282, %c0_122] : memref<104x128xf32, #tpu.memory_space<vmem>>, vector<1x128xf32>
    %c32_i32_123 = arith.constant 32 : i32
    %284 = arith.addi %4, %c32_i32_123 : i32
    %c5_i32_124 = arith.constant 5 : i32
    %285 = arith.addi %284, %c5_i32_124 : i32
    %286 = arith.index_cast %285 : i32 to index
    %287 = memref.load %arg1[%286] : memref<64xi32, #tpu.memory_space<smem>>
    %288 = arith.index_cast %287 : i32 to index
    %c0_125 = arith.constant 0 : index
    %289 = vector.load %arg2[%288, %c0_125] : memref<104x128xf32, #tpu.memory_space<vmem>>, vector<1x128xf32>
    %c40_i32_126 = arith.constant 40 : i32
    %290 = arith.addi %4, %c40_i32_126 : i32
    %c5_i32_127 = arith.constant 5 : i32
    %291 = arith.addi %290, %c5_i32_127 : i32
    %292 = arith.index_cast %291 : i32 to index
    %293 = memref.load %arg1[%292] : memref<64xi32, #tpu.memory_space<smem>>
    %294 = arith.index_cast %293 : i32 to index
    %c0_128 = arith.constant 0 : index
    %295 = vector.load %arg2[%294, %c0_128] : memref<104x128xf32, #tpu.memory_space<vmem>>, vector<1x128xf32>
    %c48_i32_129 = arith.constant 48 : i32
    %296 = arith.addi %4, %c48_i32_129 : i32
    %c5_i32_130 = arith.constant 5 : i32
    %297 = arith.addi %296, %c5_i32_130 : i32
    %298 = arith.index_cast %297 : i32 to index
    %299 = memref.load %arg1[%298] : memref<64xi32, #tpu.memory_space<smem>>
    %300 = arith.index_cast %299 : i32 to index
    %c0_131 = arith.constant 0 : index
    %301 = vector.load %arg2[%300, %c0_131] : memref<104x128xf32, #tpu.memory_space<vmem>>, vector<1x128xf32>
    %c56_i32_132 = arith.constant 56 : i32
    %302 = arith.addi %4, %c56_i32_132 : i32
    %c5_i32_133 = arith.constant 5 : i32
    %303 = arith.addi %302, %c5_i32_133 : i32
    %304 = arith.index_cast %303 : i32 to index
    %305 = memref.load %arg1[%304] : memref<64xi32, #tpu.memory_space<smem>>
    %306 = arith.index_cast %305 : i32 to index
    %c0_134 = arith.constant 0 : index
    %307 = vector.load %arg2[%306, %c0_134] : memref<104x128xf32, #tpu.memory_space<vmem>>, vector<1x128xf32>
    %308 = tpu.concatenate %265, %271, %277, %283, %289, %295, %301, %307 in 0 : vector<1x128xf32>, vector<1x128xf32>, vector<1x128xf32>, vector<1x128xf32>, vector<1x128xf32>, vector<1x128xf32>, vector<1x128xf32>, vector<1x128xf32> -> vector<8x128xf32>
    %309 = arith.index_cast %1 : i32 to index
    %c640 = arith.constant 640 : index
    %310 = vector.load %arg8[%309, %c640] : memref<8x1024xf32, #tpu.memory_space<vmem>>, vector<8x128xf32>
    tpu.vector_store %arg8[%309, %c640], %308 {strides = array<i32>} : memref<8x1024xf32, #tpu.memory_space<vmem>>, vector<8x128xf32>,
    %c0_i32_135 = arith.constant 0 : i32
    %311 = arith.addi %4, %c0_i32_135 : i32
    %c6_i32 = arith.constant 6 : i32
    %312 = arith.addi %311, %c6_i32 : i32
    %313 = arith.index_cast %312 : i32 to index
    %314 = memref.load %arg1[%313] : memref<64xi32, #tpu.memory_space<smem>>
    %315 = arith.index_cast %314 : i32 to index
    %c0_136 = arith.constant 0 : index
    %316 = vector.load %arg2[%315, %c0_136] : memref<104x128xf32, #tpu.memory_space<vmem>>, vector<1x128xf32>
    %c8_i32_137 = arith.constant 8 : i32
    %317 = arith.addi %4, %c8_i32_137 : i32
    %c6_i32_138 = arith.constant 6 : i32
    %318 = arith.addi %317, %c6_i32_138 : i32
    %319 = arith.index_cast %318 : i32 to index
    %320 = memref.load %arg1[%319] : memref<64xi32, #tpu.memory_space<smem>>
    %321 = arith.index_cast %320 : i32 to index
    %c0_139 = arith.constant 0 : index
    %322 = vector.load %arg2[%321, %c0_139] : memref<104x128xf32, #tpu.memory_space<vmem>>, vector<1x128xf32>
    %c16_i32_140 = arith.constant 16 : i32
    %323 = arith.addi %4, %c16_i32_140 : i32
    %c6_i32_141 = arith.constant 6 : i32
    %324 = arith.addi %323, %c6_i32_141 : i32
    %325 = arith.index_cast %324 : i32 to index
    %326 = memref.load %arg1[%325] : memref<64xi32, #tpu.memory_space<smem>>
    %327 = arith.index_cast %326 : i32 to index
    %c0_142 = arith.constant 0 : index
    %328 = vector.load %arg2[%327, %c0_142] : memref<104x128xf32, #tpu.memory_space<vmem>>, vector<1x128xf32>
    %c24_i32_143 = arith.constant 24 : i32
    %329 = arith.addi %4, %c24_i32_143 : i32
    %c6_i32_144 = arith.constant 6 : i32
    %330 = arith.addi %329, %c6_i32_144 : i32
    %331 = arith.index_cast %330 : i32 to index
    %332 = memref.load %arg1[%331] : memref<64xi32, #tpu.memory_space<smem>>
    %333 = arith.index_cast %332 : i32 to index
    %c0_145 = arith.constant 0 : index
    %334 = vector.load %arg2[%333, %c0_145] : memref<104x128xf32, #tpu.memory_space<vmem>>, vector<1x128xf32>
    %c32_i32_146 = arith.constant 32 : i32
    %335 = arith.addi %4, %c32_i32_146 : i32
    %c6_i32_147 = arith.constant 6 : i32
    %336 = arith.addi %335, %c6_i32_147 : i32
    %337 = arith.index_cast %336 : i32 to index
    %338 = memref.load %arg1[%337] : memref<64xi32, #tpu.memory_space<smem>>
    %339 = arith.index_cast %338 : i32 to index
    %c0_148 = arith.constant 0 : index
    %340 = vector.load %arg2[%339, %c0_148] : memref<104x128xf32, #tpu.memory_space<vmem>>, vector<1x128xf32>
    %c40_i32_149 = arith.constant 40 : i32
    %341 = arith.addi %4, %c40_i32_149 : i32
    %c6_i32_150 = arith.constant 6 : i32
    %342 = arith.addi %341, %c6_i32_150 : i32
    %343 = arith.index_cast %342 : i32 to index
    %344 = memref.load %arg1[%343] : memref<64xi32, #tpu.memory_space<smem>>
    %345 = arith.index_cast %344 : i32 to index
    %c0_151 = arith.constant 0 : index
    %346 = vector.load %arg2[%345, %c0_151] : memref<104x128xf32, #tpu.memory_space<vmem>>, vector<1x128xf32>
    %c48_i32_152 = arith.constant 48 : i32
    %347 = arith.addi %4, %c48_i32_152 : i32
    %c6_i32_153 = arith.constant 6 : i32
    %348 = arith.addi %347, %c6_i32_153 : i32
    %349 = arith.index_cast %348 : i32 to index
    %350 = memref.load %arg1[%349] : memref<64xi32, #tpu.memory_space<smem>>
    %351 = arith.index_cast %350 : i32 to index
    %c0_154 = arith.constant 0 : index
    %352 = vector.load %arg2[%351, %c0_154] : memref<104x128xf32, #tpu.memory_space<vmem>>, vector<1x128xf32>
    %c56_i32_155 = arith.constant 56 : i32
    %353 = arith.addi %4, %c56_i32_155 : i32
    %c6_i32_156 = arith.constant 6 : i32
    %354 = arith.addi %353, %c6_i32_156 : i32
    %355 = arith.index_cast %354 : i32 to index
    %356 = memref.load %arg1[%355] : memref<64xi32, #tpu.memory_space<smem>>
    %357 = arith.index_cast %356 : i32 to index
    %c0_157 = arith.constant 0 : index
    %358 = vector.load %arg2[%357, %c0_157] : memref<104x128xf32, #tpu.memory_space<vmem>>, vector<1x128xf32>
    %359 = tpu.concatenate %316, %322, %328, %334, %340, %346, %352, %358 in 0 : vector<1x128xf32>, vector<1x128xf32>, vector<1x128xf32>, vector<1x128xf32>, vector<1x128xf32>, vector<1x128xf32>, vector<1x128xf32>, vector<1x128xf32> -> vector<8x128xf32>
    %360 = arith.index_cast %1 : i32 to index
    %c768 = arith.constant 768 : index
    %361 = vector.load %arg8[%360, %c768] : memref<8x1024xf32, #tpu.memory_space<vmem>>, vector<8x128xf32>
    tpu.vector_store %arg8[%360, %c768], %359 {strides = array<i32>} : memref<8x1024xf32, #tpu.memory_space<vmem>>, vector<8x128xf32>,
    %c0_i32_158 = arith.constant 0 : i32
    %362 = arith.addi %4, %c0_i32_158 : i32
    %c7_i32 = arith.constant 7 : i32
    %363 = arith.addi %362, %c7_i32 : i32
    %364 = arith.index_cast %363 : i32 to index
    %365 = memref.load %arg1[%364] : memref<64xi32, #tpu.memory_space<smem>>
    %366 = arith.index_cast %365 : i32 to index
    %c0_159 = arith.constant 0 : index
    %367 = vector.load %arg2[%366, %c0_159] : memref<104x128xf32, #tpu.memory_space<vmem>>, vector<1x128xf32>
    %c8_i32_160 = arith.constant 8 : i32
    %368 = arith.addi %4, %c8_i32_160 : i32
    %c7_i32_161 = arith.constant 7 : i32
    %369 = arith.addi %368, %c7_i32_161 : i32
    %370 = arith.index_cast %369 : i32 to index
    %371 = memref.load %arg1[%370] : memref<64xi32, #tpu.memory_space<smem>>
    %372 = arith.index_cast %371 : i32 to index
    %c0_162 = arith.constant 0 : index
    %373 = vector.load %arg2[%372, %c0_162] : memref<104x128xf32, #tpu.memory_space<vmem>>, vector<1x128xf32>
    %c16_i32_163 = arith.constant 16 : i32
    %374 = arith.addi %4, %c16_i32_163 : i32
    %c7_i32_164 = arith.constant 7 : i32
    %375 = arith.addi %374, %c7_i32_164 : i32
    %376 = arith.index_cast %375 : i32 to index
    %377 = memref.load %arg1[%376] : memref<64xi32, #tpu.memory_space<smem>>
    %378 = arith.index_cast %377 : i32 to index
    %c0_165 = arith.constant 0 : index
    %379 = vector.load %arg2[%378, %c0_165] : memref<104x128xf32, #tpu.memory_space<vmem>>, vector<1x128xf32>
    %c24_i32_166 = arith.constant 24 : i32
    %380 = arith.addi %4, %c24_i32_166 : i32
    %c7_i32_167 = arith.constant 7 : i32
    %381 = arith.addi %380, %c7_i32_167 : i32
    %382 = arith.index_cast %381 : i32 to index
    %383 = memref.load %arg1[%382] : memref<64xi32, #tpu.memory_space<smem>>
    %384 = arith.index_cast %383 : i32 to index
    %c0_168 = arith.constant 0 : index
    %385 = vector.load %arg2[%384, %c0_168] : memref<104x128xf32, #tpu.memory_space<vmem>>, vector<1x128xf32>
    %c32_i32_169 = arith.constant 32 : i32
    %386 = arith.addi %4, %c32_i32_169 : i32
    %c7_i32_170 = arith.constant 7 : i32
    %387 = arith.addi %386, %c7_i32_170 : i32
    %388 = arith.index_cast %387 : i32 to index
    %389 = memref.load %arg1[%388] : memref<64xi32, #tpu.memory_space<smem>>
    %390 = arith.index_cast %389 : i32 to index
    %c0_171 = arith.constant 0 : index
    %391 = vector.load %arg2[%390, %c0_171] : memref<104x128xf32, #tpu.memory_space<vmem>>, vector<1x128xf32>
    %c40_i32_172 = arith.constant 40 : i32
    %392 = arith.addi %4, %c40_i32_172 : i32
    %c7_i32_173 = arith.constant 7 : i32
    %393 = arith.addi %392, %c7_i32_173 : i32
    %394 = arith.index_cast %393 : i32 to index
    %395 = memref.load %arg1[%394] : memref<64xi32, #tpu.memory_space<smem>>
    %396 = arith.index_cast %395 : i32 to index
    %c0_174 = arith.constant 0 : index
    %397 = vector.load %arg2[%396, %c0_174] : memref<104x128xf32, #tpu.memory_space<vmem>>, vector<1x128xf32>
    %c48_i32_175 = arith.constant 48 : i32
    %398 = arith.addi %4, %c48_i32_175 : i32
    %c7_i32_176 = arith.constant 7 : i32
    %399 = arith.addi %398, %c7_i32_176 : i32
    %400 = arith.index_cast %399 : i32 to index
    %401 = memref.load %arg1[%400] : memref<64xi32, #tpu.memory_space<smem>>
    %402 = arith.index_cast %401 : i32 to index
    %c0_177 = arith.constant 0 : index
    %403 = vector.load %arg2[%402, %c0_177] : memref<104x128xf32, #tpu.memory_space<vmem>>, vector<1x128xf32>
    %c56_i32_178 = arith.constant 56 : i32
    %404 = arith.addi %4, %c56_i32_178 : i32
    %c7_i32_179 = arith.constant 7 : i32
    %405 = arith.addi %404, %c7_i32_179 : i32
    %406 = arith.index_cast %405 : i32 to index
    %407 = memref.load %arg1[%406] : memref<64xi32, #tpu.memory_space<smem>>
    %408 = arith.index_cast %407 : i32 to index
    %c0_180 = arith.constant 0 : index
    %409 = vector.load %arg2[%408, %c0_180] : memref<104x128xf32, #tpu.memory_space<vmem>>, vector<1x128xf32>
    %410 = tpu.concatenate %367, %373, %379, %385, %391, %397, %403, %409 in 0 : vector<1x128xf32>, vector<1x128xf32>, vector<1x128xf32>, vector<1x128xf32>, vector<1x128xf32>, vector<1x128xf32>, vector<1x128xf32>, vector<1x128xf32> -> vector<8x128xf32>
    %411 = arith.index_cast %1 : i32 to index
    %c896 = arith.constant 896 : index
    %412 = vector.load %arg8[%411, %c896] : memref<8x1024xf32, #tpu.memory_space<vmem>>, vector<8x128xf32>
    tpu.vector_store %arg8[%411, %c896], %410 {strides = array<i32>} : memref<8x1024xf32, #tpu.memory_space<vmem>>, vector<8x128xf32>,
    %c1_i32_181 = arith.constant 1 : i32
    %c0_182 = arith.constant 0 : index
    %c0_183 = arith.constant 0 : index
    %413 = vector.load %arg8[%c0_182, %c0_183] : memref<8x1024xf32, #tpu.memory_space<vmem>>, vector<8x1024xf32>
    %414 = arith.truncf %413 : vector<8x1024xf32> to vector<8x1024xbf16>
    %c0_184 = arith.constant 0 : index
    %c0_185 = arith.constant 0 : index
    %415 = vector.load %arg3[%c0_184, %c0_185] : memref<1024x128xbf16, #tpu.memory_space<vmem>>, vector<1024x128xbf16>
    %cst = arith.constant dense<0.000000e+00> : vector<8x128xf32>
    %416 = tpu.matmul %414, %415, %cst {dimension_numbers = #tpu.dot_dimension_numbers<[1], [0], [0], [1], [0, 0, 1, 1], [], []>} : vector<8x1024xbf16>, vector<1024x128xbf16>, vector<8x128xf32> -> vector<8x128xf32>
    %c0_186 = arith.constant 0 : index
    %c0_187 = arith.constant 0 : index
    %417 = vector.load %arg4[%c0_186, %c0_187] : memref<1x128xf32, #tpu.memory_space<vmem>>, vector<1x128xf32>
    %418 = vector.broadcast %417 : vector<1x128xf32> to vector<8x128xf32>
    %419 = arith.addf %416, %418 : vector<8x128xf32>
    %cst_188 = arith.constant 0.000000e+00 : f32
    %420 = vector.broadcast %cst_188 : f32 to vector<8x128xf32>
    %421 = arith.maximumf %419, %420 : vector<8x128xf32>
    %422 = arith.truncf %421 : vector<8x128xf32> to vector<8x128xbf16>
    %c0_189 = arith.constant 0 : index
    %c0_190 = arith.constant 0 : index
    %423 = vector.load %arg5[%c0_189, %c0_190] : memref<128x128xbf16, #tpu.memory_space<vmem>>, vector<128x128xbf16>
    %cst_191 = arith.constant dense<0.000000e+00> : vector<8x128xf32>
    %424 = tpu.matmul %422, %423, %cst_191 {dimension_numbers = #tpu.dot_dimension_numbers<[1], [0], [0], [1], [0, 0, 1, 1], [], []>} : vector<8x128xbf16>, vector<128x128xbf16>, vector<8x128xf32> -> vector<8x128xf32>
    %c0_192 = arith.constant 0 : index
    %c0_193 = arith.constant 0 : index
    %425 = vector.load %arg6[%c0_192, %c0_193] : memref<1x128xf32, #tpu.memory_space<vmem>>, vector<1x128xf32>
    %426 = vector.broadcast %425 : vector<1x128xf32> to vector<8x128xf32>
    %427 = arith.addf %424, %426 : vector<8x128xf32>
    %c0_194 = arith.constant 0 : index
    %c0_195 = arith.constant 0 : index
    %428 = vector.load %arg7[%c0_194, %c0_195] : memref<8x128xf32, #tpu.memory_space<vmem>>, vector<8x128xf32>
    tpu.vector_store %arg7[%c0_194, %c0_195], %427 {strides = array<i32>} : memref<8x128xf32, #tpu.memory_space<vmem>>, vector<8x128xf32>,
    return
  }
  func.func @transform_0(%arg0: i32, %arg1: memref<64xi32, #tpu.memory_space<smem>>) -> (i32, i32) {
    %c0_i32 = arith.constant 0 : i32
    %c0_i32_0 = arith.constant 0 : i32
    %c0_i32_1 = arith.constant 0 : i32
    return %c0_i32, %c0_i32_0 : i32, i32
  }
  func.func @transform_1(%arg0: i32, %arg1: memref<64xi32, #tpu.memory_space<smem>>) -> (i32, i32) {
    %c0_i32 = arith.constant 0 : i32
    %c0_i32_0 = arith.constant 0 : i32
    %c0_i32_1 = arith.constant 0 : i32
    return %c0_i32, %c0_i32_0 : i32, i32
  }
  func.func @transform_2(%arg0: i32, %arg1: memref<64xi32, #tpu.memory_space<smem>>) -> (i32, i32) {
    %c0_i32 = arith.constant 0 : i32
    %c0_i32_0 = arith.constant 0 : i32
    %c0_i32_1 = arith.constant 0 : i32
    return %c0_i32, %c0_i32_0 : i32, i32
  }
  func.func @transform_3(%arg0: i32, %arg1: memref<64xi32, #tpu.memory_space<smem>>) -> (i32, i32) {
    %c0_i32 = arith.constant 0 : i32
    %c0_i32_0 = arith.constant 0 : i32
    %c0_i32_1 = arith.constant 0 : i32
    return %c0_i32, %c0_i32_0 : i32, i32
  }
  func.func @transform_4(%arg0: i32, %arg1: memref<64xi32, #tpu.memory_space<smem>>) -> (i32, i32) {
    %c0_i32 = arith.constant 0 : i32
    %c0_i32_0 = arith.constant 0 : i32
    %c0_i32_1 = arith.constant 0 : i32
    return %c0_i32, %c0_i32_0 : i32, i32
  }
  func.func @transform_5(%arg0: i32, %arg1: memref<64xi32, #tpu.memory_space<smem>>) -> (i32, i32) {
    %c0_i32 = arith.constant 0 : i32
    %c0_i32_0 = arith.constant 0 : i32
    return %arg0, %c0_i32 : i32, i32
  }
}

</mosaic_0001>

<llo_original>
// kernel: tpu_custom_call.1
$region0: #{tpu_custom_call.1}
  #allocation0 [shape = 'u32[]', space=smem, size = 0x4, offset = 0x4, fixed_abs, tag = 'smem constant byte address 0x4 - core index']
  #allocation1 [shape = 'u32[72,128]{1,0:T(1,128)}', space=vmem, size = 0x9000, scoped, tag = 'internal scratch']
  #allocation2 [shape = 'f32[8,1024]{1,0:T(8,128)}', space=vmem, size = 0x8000, scoped, tag = 'scratch operand']
  #allocation3 [shape = 's32[1]{0}', space=sflag, size = 0x4, scoped, tag = 'scoped memory for tpu_custom_call.1']
  #allocation4 [shape = 'u8[512]{0}', space=smem, size = 0x200, scoped, tag = 'prefetched SMEM operand 0']
  %s0 = inlined_call_operand.hbm [shape: s32[64], index: 0, kind: input, shape index: {}]
  %s1 = inlined_call_operand.hbm [shape: f32[104,128], index: 1, kind: input, shape index: {}]
  %s2 = inlined_call_operand.hbm [shape: bf16[1024,128], index: 2, kind: input, shape index: {}]
  %s3 = inlined_call_operand.vmem [shape: f32[1,128], index: 3, kind: input, shape index: {}]
  %s4 = inlined_call_operand.hbm [shape: bf16[128,128], index: 4, kind: input, shape index: {}]
  %s5 = inlined_call_operand.vmem [shape: f32[1,128], index: 5, kind: input, shape index: {}]
  %s6 = inlined_call_operand.hbm [shape: f32[8,128], index: 6, kind: output, shape index: {}]
  %s7 = sld [smem:[#allocation0]]
  $region42: #{tpu_custom_call.1} parent=0
    _
  %s9 = ssub.s32 1, %s7
  %s10 = scalar_select 0, %s9, %s7
  %s12 = sshll.u32 %s0, 4
  %s13 = int_to_ptr.hbm [resolvable:$true] %s12
  %15 = dma.hbm_to_smem %s13, 16, [#allocation4], [#allocation3]
  %17 = dma.done [#allocation3], 16
  %18 = sfence
  $region1: #{tpu_custom_call.1} parent=0
    #allocation5 [shape = 'u8[53248]{0}', space=vmem, size = 0xd000, scoped, tag = 'input window, operand 1, single buffered']
    #allocation6 [shape = 's32[1]{0}', space=sflag, size = 0x4, scoped, tag = 'scoped memory for tpu_custom_call.1']
    #allocation7 [shape = 's32[1]{0}', space=sflag, size = 0x4, scoped, tag = 'scoped memory for tpu_custom_call.1']
    #allocation8 [shape = 'u8[262144]{0}', space=vmem, size = 0x40000, scoped, tag = 'input window, operand 2, single buffered']
    #allocation9 [shape = 's32[1]{0}', space=sflag, size = 0x4, scoped, tag = 'scoped memory for tpu_custom_call.1']
    #allocation10 [shape = 'u8[32768]{0}', space=vmem, size = 0x8000, scoped, tag = 'input window, operand 4, single buffered']
    #allocation11 [shape = 'u8[4096]{0}', space=vmem, size = 0x1000, scoped, tag = 'output window, operand 0, single buffered']
    %19 = vsyncpa [#allocation6], 0
    %20 = vsyncpa [#allocation9], 0
    %21 = vsyncpa [#allocation7], 0
    // Predicated region
    $region2: #{tpu_custom_call.1} parent=1 // pred_check
      _
    $region3: #{tpu_custom_call.1} parent=1 // pred_check_branch
      %23 = sbr.rel (0) target = $region5
    $region4: #{tpu_custom_call.1} parent=1 // pred_region
      %25 = vsyncadd [#allocation6], 0
      %s26 = sshll.u32 %s1, 4
      %s27 = int_to_ptr.hbm [resolvable:$true] %s26
      %s28 = sshll.u32 [#allocation5], 4
      %s29 = int_to_ptr.vmem [resolvable:$true] %s28
      %34 = dma.hbm_to_vmem [thread:$0]  %s27, 1664, %s29, [#allocation6], 128, 128, 8
    $region5: #{tpu_custom_call.1} parent=1 // pred_fallthru
      _
    // Predicated region
    $region6: #{tpu_custom_call.1} parent=1 // pred_check
      _
    $region7: #{tpu_custom_call.1} parent=1 // pred_check_branch
      %36 = sbr.rel (0) target = $region9
    $region8: #{tpu_custom_call.1} parent=1 // pred_region
      %38 = vsyncadd [#allocation9], 0
      %s39 = sshll.u32 %s2, 4
      %s40 = int_to_ptr.hbm [resolvable:$true] %s39
      %s41 = sshll.u32 [#allocation8], 4
      %s42 = int_to_ptr.vmem [resolvable:$true] %s41
      %47 = dma.hbm_to_vmem [thread:$0]  %s40, 8192, %s42, [#allocation9], 64, 64, 4
    $region9: #{tpu_custom_call.1} parent=1 // pred_fallthru
      _
    // Predicated region
    $region10: #{tpu_custom_call.1} parent=1 // pred_check
      _
    $region11: #{tpu_custom_call.1} parent=1 // pred_check_branch
      %49 = sbr.rel (0) target = $region13
    $region12: #{tpu_custom_call.1} parent=1 // pred_region
      _
    $region13: #{tpu_custom_call.1} parent=1 // pred_fallthru
      _
    // Predicated region
    $region14: #{tpu_custom_call.1} parent=1 // pred_check
      _
    $region15: #{tpu_custom_call.1} parent=1 // pred_check_branch
      %51 = sbr.rel (0) target = $region17
    $region16: #{tpu_custom_call.1} parent=1 // pred_region
      %53 = vsyncadd [#allocation9], 0
      %s54 = sshll.u32 %s4, 4
      %s55 = int_to_ptr.hbm [resolvable:$true] %s54
      %s56 = sshll.u32 [#allocation10], 4
      %s57 = int_to_ptr.vmem [resolvable:$true] %s56
      %62 = dma.hbm_to_vmem [thread:$0]  %s55, 1024, %s57, [#allocation9], 64, 64, 4
    $region17: #{tpu_custom_call.1} parent=1 // pred_fallthru
      _
    // Predicated region
    $region18: #{tpu_custom_call.1} parent=1 // pred_check
      _
    $region19: #{tpu_custom_call.1} parent=1 // pred_check_branch
      %64 = sbr.rel (0) target = $region21
    $region20: #{tpu_custom_call.1} parent=1 // pred_region
      _
    $region21: #{tpu_custom_call.1} parent=1 // pred_fallthru
      _
    // Predicated region
    $region22: #{tpu_custom_call.1} parent=1 // pred_check
      _
    $region23: #{tpu_custom_call.1} parent=1 // pred_check_branch
      %66 = sbr.rel (0) target = $region25
    $region24: #{tpu_custom_call.1} parent=1 // pred_region
      %68 = dma.done [#allocation6], 1664
    $region25: #{tpu_custom_call.1} parent=1 // pred_fallthru
      _
    // Predicated region
    $region26: #{tpu_custom_call.1} parent=1 // pred_check
      _
    $region27: #{tpu_custom_call.1} parent=1 // pred_check_branch
      %70 = sbr.rel (0) target = $region29
    $region28: #{tpu_custom_call.1} parent=1 // pred_region
      %72 = dma.done [#allocation9], 8192
    $region29: #{tpu_custom_call.1} parent=1 // pred_fallthru
      _
    // Predicated region
    $region30: #{tpu_custom_call.1} parent=1 // pred_check
      _
    $region31: #{tpu_custom_call.1} parent=1 // pred_check_branch
      %74 = sbr.rel (0) target = $region33
    $region32: #{tpu_custom_call.1} parent=1 // pred_region
      %76 = dma.done [#allocation9], 1024
    $region33: #{tpu_custom_call.1} parent=1 // pred_fallthru
      _
    %s77 = smul.u32 0, 8
    %s78 = sadd.s32 %s77, 0
    %s79 = smul.u32 %s78, 8
    %s80 = sld [smem:[#allocation4 + %s79]]
    %s81 = scalar_lea.vmem [#allocation5], %s80
    %v82 = vld [vmem:[%s81] sm:$0x1]
    %s83 = sadd.s32 %s79, 8
    %s84 = sld [smem:[#allocation4 + %s83]]
    %s85 = scalar_lea.vmem [#allocation5], %s84
    %v86 = vld [vmem:[%s85] sm:$0x1]
    %s87 = sadd.s32 %s79, 16
    %s88 = sld [smem:[#allocation4 + %s87]]
    %s89 = scalar_lea.vmem [#allocation5], %s88
    %v90 = vld [vmem:[%s89] sm:$0x1]
    %s91 = sadd.s32 %s79, 24
    %s92 = sld [smem:[#allocation4 + %s91]]
    %s93 = scalar_lea.vmem [#allocation5], %s92
    %v94 = vld [vmem:[%s93] sm:$0x1]
    %s95 = sadd.s32 %s79, 32
    %s96 = sld [smem:[#allocation4 + %s95]]
    %s97 = scalar_lea.vmem [#allocation5], %s96
    %v98 = vld [vmem:[%s97] sm:$0x1]
    %s99 = sadd.s32 %s79, 40
    %s100 = sld [smem:[#allocation4 + %s99]]
    %s101 = scalar_lea.vmem [#allocation5], %s100
    %v102 = vld [vmem:[%s101] sm:$0x1]
    %s103 = sadd.s32 %s79, 48
    %s104 = sld [smem:[#allocation4 + %s103]]
    %s105 = scalar_lea.vmem [#allocation5], %s104
    %v106 = vld [vmem:[%s105] sm:$0x1]
    %s107 = sadd.s32 %s79, 56
    %s108 = sld [smem:[#allocation4 + %s107]]
    %s109 = scalar_lea.vmem [#allocation5], %s108
    %v110 = vld [vmem:[%s109] sm:$0x1]
    %v112 = vrot.slane %v86, 7
    %v115 = vrot.slane %v90, 6
    %v118 = vrot.slane %v94, 5
    %v121 = vrot.slane %v98, 4
    %v124 = vrot.slane %v102, 3
    %v127 = vrot.slane %v106, 2
    %v130 = vrot.slane %v110, 1
    %vm132 = vcmask 1040384
    %v133 = vsel %vm132, %v82, %v112
    %vm134 = vcmask 1041408
    %v135 = vsel %vm134, %v133, %v115
    %vm136 = vcmask 1042432
    %v137 = vsel %vm136, %v135, %v118
    %vm138 = vcmask 1043456
    %v139 = vsel %vm138, %v137, %v121
    %vm140 = vcmask 1044480
    %v141 = vsel %vm140, %v139, %v124
    %vm142 = vcmask 1045504
    %v143 = vsel %vm142, %v141, %v127
    %vm144 = vcmask 1046528
    %v145 = vsel %vm144, %v143, %v130
    %s146 = smul.u32 0, 8
    %s147 = smul.addr %s146, 8
    %s148 = scalar_lea.vmem [#allocation2], %s147
    %149 = vst [vmem:[%s148] sm:$0xff] %v145
    %s150 = sadd.s32 %s79, 1
    %s151 = sld [smem:[#allocation4 + %s150]]
    %s152 = scalar_lea.vmem [#allocation5], %s151
    %v153 = vld [vmem:[%s152] sm:$0x1]
    %s154 = sadd.s32 %s79, 9
    %s155 = sld [smem:[#allocation4 + %s154]]
    %s156 = scalar_lea.vmem [#allocation5], %s155
    %v157 = vld [vmem:[%s156] sm:$0x1]
    %s158 = sadd.s32 %s79, 17
    %s159 = sld [smem:[#allocation4 + %s158]]
    %s160 = scalar_lea.vmem [#allocation5], %s159
    %v161 = vld [vmem:[%s160] sm:$0x1]
    %s162 = sadd.s32 %s79, 25
    %s163 = sld [smem:[#allocation4 + %s162]]
    %s164 = scalar_lea.vmem [#allocation5], %s163
    %v165 = vld [vmem:[%s164] sm:$0x1]
    %s166 = sadd.s32 %s79, 33
    %s167 = sld [smem:[#allocation4 + %s166]]
    %s168 = scalar_lea.vmem [#allocation5], %s167
    %v169 = vld [vmem:[%s168] sm:$0x1]
    %s170 = sadd.s32 %s79, 41
    %s171 = sld [smem:[#allocation4 + %s170]]
    %s172 = scalar_lea.vmem [#allocation5], %s171
    %v173 = vld [vmem:[%s172] sm:$0x1]
    %s174 = sadd.s32 %s79, 49
    %s175 = sld [smem:[#allocation4 + %s174]]
    %s176 = scalar_lea.vmem [#allocation5], %s175
    %v177 = vld [vmem:[%s176] sm:$0x1]
    %s178 = sadd.s32 %s79, 57
    %s179 = sld [smem:[#allocation4 + %s178]]
    %s180 = scalar_lea.vmem [#allocation5], %s179
    %v181 = vld [vmem:[%s180] sm:$0x1]
    %v183 = vrot.slane %v157, 7
    %v186 = vrot.slane %v161, 6
    %v189 = vrot.slane %v165, 5
    %v192 = vrot.slane %v169, 4
    %v195 = vrot.slane %v173, 3
    %v198 = vrot.slane %v177, 2
    %v201 = vrot.slane %v181, 1
    %v203 = vsel %vm132, %v153, %v183
    %v204 = vsel %vm134, %v203, %v186
    %v205 = vsel %vm136, %v204, %v189
    %v206 = vsel %vm138, %v205, %v192
    %v207 = vsel %vm140, %v206, %v195
    %v208 = vsel %vm142, %v207, %v198
    %v209 = vsel %vm144, %v208, %v201
    %210 = vst [vmem:[%s148 + $0x8] sm:$0xff] %v209
    %s211 = sadd.s32 %s79, 2
    %s212 = sld [smem:[#allocation4 + %s211]]
    %s213 = scalar_lea.vmem [#allocation5], %s212
    %v214 = vld [vmem:[%s213] sm:$0x1]
    %s215 = sadd.s32 %s79, 10
    %s216 = sld [smem:[#allocation4 + %s215]]
    %s217 = scalar_lea.vmem [#allocation5], %s216
    %v218 = vld [vmem:[%s217] sm:$0x1]
    %s219 = sadd.s32 %s79, 18
    %s220 = sld [smem:[#allocation4 + %s219]]
    %s221 = scalar_lea.vmem [#allocation5], %s220
    %v222 = vld [vmem:[%s221] sm:$0x1]
    %s223 = sadd.s32 %s79, 26
    %s224 = sld [smem:[#allocation4 + %s223]]
    %s225 = scalar_lea.vmem [#allocation5], %s224
    %v226 = vld [vmem:[%s225] sm:$0x1]
    %s227 = sadd.s32 %s79, 34
    %s228 = sld [smem:[#allocation4 + %s227]]
    %s229 = scalar_lea.vmem [#allocation5], %s228
    %v230 = vld [vmem:[%s229] sm:$0x1]
    %s231 = sadd.s32 %s79, 42
    %s232 = sld [smem:[#allocation4 + %s231]]
    %s233 = scalar_lea.vmem [#allocation5], %s232
    %v234 = vld [vmem:[%s233] sm:$0x1]
    %s235 = sadd.s32 %s79, 50
    %s236 = sld [smem:[#allocation4 + %s235]]
    %s237 = scalar_lea.vmem [#allocation5], %s236
    %v238 = vld [vmem:[%s237] sm:$0x1]
    %s239 = sadd.s32 %s79, 58
    %s240 = sld [smem:[#allocation4 + %s239]]
    %s241 = scalar_lea.vmem [#allocation5], %s240
    %v242 = vld [vmem:[%s241] sm:$0x1]
    %v244 = vrot.slane %v218, 7
    %v247 = vrot.slane %v222, 6
    %v250 = vrot.slane %v226, 5
    %v253 = vrot.slane %v230, 4
    %v256 = vrot.slane %v234, 3
    %v259 = vrot.slane %v238, 2
    %v262 = vrot.slane %v242, 1
    %v264 = vsel %vm132, %v214, %v244
    %v265 = vsel %vm134, %v264, %v247
    %v266 = vsel %vm136, %v265, %v250
    %v267 = vsel %vm138, %v266, %v253
    %v268 = vsel %vm140, %v267, %v256
    %v269 = vsel %vm142, %v268, %v259
    %v270 = vsel %vm144, %v269, %v262
    %271 = vst [vmem:[%s148 + $0x10] sm:$0xff] %v270
    %s272 = sadd.s32 %s79, 3
    %s273 = sld [smem:[#allocation4 + %s272]]
    %s274 = scalar_lea.vmem [#allocation5], %s273
    %v275 = vld [vmem:[%s274] sm:$0x1]
    %s276 = sadd.s32 %s79, 11
    %s277 = sld [smem:[#allocation4 + %s276]]
    %s278 = scalar_lea.vmem [#allocation5], %s277
    %v279 = vld [vmem:[%s278] sm:$0x1]
    %s280 = sadd.s32 %s79, 19
    %s281 = sld [smem:[#allocation4 + %s280]]
    %s282 = scalar_lea.vmem [#allocation5], %s281
    %v283 = vld [vmem:[%s282] sm:$0x1]
    %s284 = sadd.s32 %s79, 27
    %s285 = sld [smem:[#allocation4 + %s284]]
    %s286 = scalar_lea.vmem [#allocation5], %s285
    %v287 = vld [vmem:[%s286] sm:$0x1]
    %s288 = sadd.s32 %s79, 35
    %s289 = sld [smem:[#allocation4 + %s288]]
    %s290 = scalar_lea.vmem [#allocation5], %s289
    %v291 = vld [vmem:[%s290] sm:$0x1]
    %s292 = sadd.s32 %s79, 43
    %s293 = sld [smem:[#allocation4 + %s292]]
    %s294 = scalar_lea.vmem [#allocation5], %s293
    %v295 = vld [vmem:[%s294] sm:$0x1]
    %s296 = sadd.s32 %s79, 51
    %s297 = sld [smem:[#allocation4 + %s296]]
    %s298 = scalar_lea.vmem [#allocation5], %s297
    %v299 = vld [vmem:[%s298] sm:$0x1]
    %s300 = sadd.s32 %s79, 59
    %s301 = sld [smem:[#allocation4 + %s300]]
    %s302 = scalar_lea.vmem [#allocation5], %s301
    %v303 = vld [vmem:[%s302] sm:$0x1]
    %v305 = vrot.slane %v279, 7
    %v308 = vrot.slane %v283, 6
    %v311 = vrot.slane %v287, 5
    %v314 = vrot.slane %v291, 4
    %v317 = vrot.slane %v295, 3
    %v320 = vrot.slane %v299, 2
    %v323 = vrot.slane %v303, 1
    %v325 = vsel %vm132, %v275, %v305
    %v326 = vsel %vm134, %v325, %v308
    %v327 = vsel %vm136, %v326, %v311
    %v328 = vsel %vm138, %v327, %v314
    %v329 = vsel %vm140, %v328, %v317
    %v330 = vsel %vm142, %v329, %v320
    %v331 = vsel %vm144, %v330, %v323
    %332 = vst [vmem:[%s148 + $0x18] sm:$0xff] %v331
    %s333 = sadd.s32 %s79, 4
    %s334 = sld [smem:[#allocation4 + %s333]]
    %s335 = scalar_lea.vmem [#allocation5], %s334
    %v336 = vld [vmem:[%s335] sm:$0x1]
    %s337 = sadd.s32 %s79, 12
    %s338 = sld [smem:[#allocation4 + %s337]]
    %s339 = scalar_lea.vmem [#allocation5], %s338
    %v340 = vld [vmem:[%s339] sm:$0x1]
    %s341 = sadd.s32 %s79, 20
    %s342 = sld [smem:[#allocation4 + %s341]]
    %s343 = scalar_lea.vmem [#allocation5], %s342
    %v344 = vld [vmem:[%s343] sm:$0x1]
    %s345 = sadd.s32 %s79, 28
    %s346 = sld [smem:[#allocation4 + %s345]]
    %s347 = scalar_lea.vmem [#allocation5], %s346
    %v348 = vld [vmem:[%s347] sm:$0x1]
    %s349 = sadd.s32 %s79, 36
    %s350 = sld [smem:[#allocation4 + %s349]]
    %s351 = scalar_lea.vmem [#allocation5], %s350
    %v352 = vld [vmem:[%s351] sm:$0x1]
    %s353 = sadd.s32 %s79, 44
    %s354 = sld [smem:[#allocation4 + %s353]]
    %s355 = scalar_lea.vmem [#allocation5], %s354
    %v356 = vld [vmem:[%s355] sm:$0x1]
    %s357 = sadd.s32 %s79, 52
    %s358 = sld [smem:[#allocation4 + %s357]]
    %s359 = scalar_lea.vmem [#allocation5], %s358
    %v360 = vld [vmem:[%s359] sm:$0x1]
    %s361 = sadd.s32 %s79, 60
    %s362 = sld [smem:[#allocation4 + %s361]]
    %s363 = scalar_lea.vmem [#allocation5], %s362
    %v364 = vld [vmem:[%s363] sm:$0x1]
    %v366 = vrot.slane %v340, 7
    %v369 = vrot.slane %v344, 6
    %v372 = vrot.slane %v348, 5
    %v375 = vrot.slane %v352, 4
    %v378 = vrot.slane %v356, 3
    %v381 = vrot.slane %v360, 2
    %v384 = vrot.slane %v364, 1
    %v386 = vsel %vm132, %v336, %v366
    %v387 = vsel %vm134, %v386, %v369
    %v388 = vsel %vm136, %v387, %v372
    %v389 = vsel %vm138, %v388, %v375
    %v390 = vsel %vm140, %v389, %v378
    %v391 = vsel %vm142, %v390, %v381
    %v392 = vsel %vm144, %v391, %v384
    %393 = vst [vmem:[%s148 + $0x20] sm:$0xff] %v392
    %s394 = sadd.s32 %s79, 5
    %s395 = sld [smem:[#allocation4 + %s394]]
    %s396 = scalar_lea.vmem [#allocation5], %s395
    %v397 = vld [vmem:[%s396] sm:$0x1]
    %s398 = sadd.s32 %s79, 13
    %s399 = sld [smem:[#allocation4 + %s398]]
    %s400 = scalar_lea.vmem [#allocation5], %s399
    %v401 = vld [vmem:[%s400] sm:$0x1]
    %s402 = sadd.s32 %s79, 21
    %s403 = sld [smem:[#allocation4 + %s402]]
    %s404 = scalar_lea.vmem [#allocation5], %s403
    %v405 = vld [vmem:[%s404] sm:$0x1]
    %s406 = sadd.s32 %s79, 29
    %s407 = sld [smem:[#allocation4 + %s406]]
    %s408 = scalar_lea.vmem [#allocation5], %s407
    %v409 = vld [vmem:[%s408] sm:$0x1]
    %s410 = sadd.s32 %s79, 37
    %s411 = sld [smem:[#allocation4 + %s410]]
    %s412 = scalar_lea.vmem [#allocation5], %s411
    %v413 = vld [vmem:[%s412] sm:$0x1]
    %s414 = sadd.s32 %s79, 45
    %s415 = sld [smem:[#allocation4 + %s414]]
    %s416 = scalar_lea.vmem [#allocation5], %s415
    %v417 = vld [vmem:[%s416] sm:$0x1]
    %s418 = sadd.s32 %s79, 53
    %s419 = sld [smem:[#allocation4 + %s418]]
    %s420 = scalar_lea.vmem [#allocation5], %s419
    %v421 = vld [vmem:[%s420] sm:$0x1]
    %s422 = sadd.s32 %s79, 61
    %s423 = sld [smem:[#allocation4 + %s422]]
    %s424 = scalar_lea.vmem [#allocation5], %s423
    %v425 = vld [vmem:[%s424] sm:$0x1]
    %v427 = vrot.slane %v401, 7
    %v430 = vrot.slane %v405, 6
    %v433 = vrot.slane %v409, 5
    %v436 = vrot.slane %v413, 4
    %v439 = vrot.slane %v417, 3
    %v442 = vrot.slane %v421, 2
    %v445 = vrot.slane %v425, 1
    %v447 = vsel %vm132, %v397, %v427
    %v448 = vsel %vm134, %v447, %v430
    %v449 = vsel %vm136, %v448, %v433
    %v450 = vsel %vm138, %v449, %v436
    %v451 = vsel %vm140, %v450, %v439
    %v452 = vsel %vm142, %v451, %v442
    %v453 = vsel %vm144, %v452, %v445
    %454 = vst [vmem:[%s148 + $0x28] sm:$0xff] %v453
    %s455 = sadd.s32 %s79, 6
    %s456 = sld [smem:[#allocation4 + %s455]]
    %s457 = scalar_lea.vmem [#allocation5], %s456
    %v458 = vld [vmem:[%s457] sm:$0x1]
    %s459 = sadd.s32 %s79, 14
    %s460 = sld [smem:[#allocation4 + %s459]]
    %s461 = scalar_lea.vmem [#allocation5], %s460
    %v462 = vld [vmem:[%s461] sm:$0x1]
    %s463 = sadd.s32 %s79, 22
    %s464 = sld [smem:[#allocation4 + %s463]]
    %s465 = scalar_lea.vmem [#allocation5], %s464
    %v466 = vld [vmem:[%s465] sm:$0x1]
    %s467 = sadd.s32 %s79, 30
    %s468 = sld [smem:[#allocation4 + %s467]]
    %s469 = scalar_lea.vmem [#allocation5], %s468
    %v470 = vld [vmem:[%s469] sm:$0x1]
    %s471 = sadd.s32 %s79, 38
    %s472 = sld [smem:[#allocation4 + %s471]]
    %s473 = scalar_lea.vmem [#allocation5], %s472
    %v474 = vld [vmem:[%s473] sm:$0x1]
    %s475 = sadd.s32 %s79, 46
    %s476 = sld [smem:[#allocation4 + %s475]]
    %s477 = scalar_lea.vmem [#allocation5], %s476
    %v478 = vld [vmem:[%s477] sm:$0x1]
    %s479 = sadd.s32 %s79, 54
    %s480 = sld [smem:[#allocation4 + %s479]]
    %s481 = scalar_lea.vmem [#allocation5], %s480
    %v482 = vld [vmem:[%s481] sm:$0x1]
    %s483 = sadd.s32 %s79, 62
    %s484 = sld [smem:[#allocation4 + %s483]]
    %s485 = scalar_lea.vmem [#allocation5], %s484
    %v486 = vld [vmem:[%s485] sm:$0x1]
    %v488 = vrot.slane %v462, 7
    %v491 = vrot.slane %v466, 6
    %v494 = vrot.slane %v470, 5
    %v497 = vrot.slane %v474, 4
    %v500 = vrot.slane %v478, 3
    %v503 = vrot.slane %v482, 2
    %v506 = vrot.slane %v486, 1
    %v508 = vsel %vm132, %v458, %v488
    %v509 = vsel %vm134, %v508, %v491
    %v510 = vsel %vm136, %v509, %v494
    %v511 = vsel %vm138, %v510, %v497
    %v512 = vsel %vm140, %v511, %v500
    %v513 = vsel %vm142, %v512, %v503
    %v514 = vsel %vm144, %v513, %v506
    %515 = vst [vmem:[%s148 + $0x30] sm:$0xff] %v514
    %s516 = sadd.s32 %s79, 7
    %s517 = sld [smem:[#allocation4 + %s516]]
    %s518 = scalar_lea.vmem [#allocation5], %s517
    %v519 = vld [vmem:[%s518] sm:$0x1]
    %s520 = sadd.s32 %s79, 15
    %s521 = sld [smem:[#allocation4 + %s520]]
    %s522 = scalar_lea.vmem [#allocation5], %s521
    %v523 = vld [vmem:[%s522] sm:$0x1]
    %s524 = sadd.s32 %s79, 23
    %s525 = sld [smem:[#allocation4 + %s524]]
    %s526 = scalar_lea.vmem [#allocation5], %s525
    %v527 = vld [vmem:[%s526] sm:$0x1]
    %s528 = sadd.s32 %s79, 31
    %s529 = sld [smem:[#allocation4 + %s528]]
    %s530 = scalar_lea.vmem [#allocation5], %s529
    %v531 = vld [vmem:[%s530] sm:$0x1]
    %s532 = sadd.s32 %s79, 39
    %s533 = sld [smem:[#allocation4 + %s532]]
    %s534 = scalar_lea.vmem [#allocation5], %s533
    %v535 = vld [vmem:[%s534] sm:$0x1]
    %s536 = sadd.s32 %s79, 47
    %s537 = sld [smem:[#allocation4 + %s536]]
    %s538 = scalar_lea.vmem [#allocation5], %s537
    %v539 = vld [vmem:[%s538] sm:$0x1]
    %s540 = sadd.s32 %s79, 55
    %s541 = sld [smem:[#allocation4 + %s540]]
    %s542 = scalar_lea.vmem [#allocation5], %s541
    %v543 = vld [vmem:[%s542] sm:$0x1]
    %s544 = sadd.s32 %s79, 63
    %s545 = sld [smem:[#allocation4 + %s544]]
    %s546 = scalar_lea.vmem [#allocation5], %s545
    %v547 = vld [vmem:[%s546] sm:$0x1]
    %v549 = vrot.slane %v523, 7
    %v552 = vrot.slane %v527, 6
    %v555 = vrot.slane %v531, 5
    %v558 = vrot.slane %v535, 4
    %v561 = vrot.slane %v539, 3
    %v564 = vrot.slane %v543, 2
    %v567 = vrot.slane %v547, 1
    %v569 = vsel %vm132, %v519, %v549
    %v570 = vsel %vm134, %v569, %v552
    %v571 = vsel %vm136, %v570, %v555
    %v572 = vsel %vm138, %v571, %v558
    %v573 = vsel %vm140, %v572, %v561
    %v574 = vsel %vm142, %v573, %v564
    %v575 = vsel %vm144, %v574, %v567
    %576 = vst [vmem:[%s148 + $0x38] sm:$0xff] %v575
    %v577 = vld [vmem:[#allocation2] sm:$0xff]
    %v578 = vld [vmem:[#allocation2 + $0x8] sm:$0xff]
    %v579 = vld [vmem:[#allocation2 + $0x10] sm:$0xff]
    %v580 = vld [vmem:[#allocation2 + $0x18] sm:$0xff]
    %v581 = vld [vmem:[#allocation2 + $0x20] sm:$0xff]
    %v582 = vld [vmem:[#allocation2 + $0x28] sm:$0xff]
    %v583 = vld [vmem:[#allocation2 + $0x30] sm:$0xff]
    %v584 = vld [vmem:[#allocation2 + $0x38] sm:$0xff]
    %v585 = vpack.c.bf16 %v577, %v577
    %v586 = vpack.c.bf16 %v578, %v578
    %v587 = vpack.c.bf16 %v579, %v579
    %v588 = vpack.c.bf16 %v580, %v580
    %v589 = vpack.c.bf16 %v581, %v581
    %v590 = vpack.c.bf16 %v582, %v582
    %v591 = vpack.c.bf16 %v583, %v583
    %v592 = vpack.c.bf16 %v584, %v584
    %v593 = vld [vmem:[#allocation8] sm:$0xf]
    %v594 = vld [vmem:[#allocation8 + $0x4] sm:$0xf]
    %v595 = vld [vmem:[#allocation8 + $0x8] sm:$0xf]
    %v596 = vld [vmem:[#allocation8 + $0xc] sm:$0xf]
    %v597 = vld [vmem:[#allocation8 + $0x10] sm:$0xf]
    %v598 = vld [vmem:[#allocation8 + $0x14] sm:$0xf]
    %v599 = vld [vmem:[#allocation8 + $0x18] sm:$0xf]
    %v600 = vld [vmem:[#allocation8 + $0x1c] sm:$0xf]
    %v601 = vld [vmem:[#allocation8 + $0x20] sm:$0xf]
    %v602 = vld [vmem:[#allocation8 + $0x24] sm:$0xf]
    %v603 = vld [vmem:[#allocation8 + $0x28] sm:$0xf]
    %v604 = vld [vmem:[#allocation8 + $0x2c] sm:$0xf]
    %v605 = vld [vmem:[#allocation8 + $0x30] sm:$0xf]
    %v606 = vld [vmem:[#allocation8 + $0x34] sm:$0xf]
    %v607 = vld [vmem:[#allocation8 + $0x38] sm:$0xf]
    %v608 = vld [vmem:[#allocation8 + $0x3c] sm:$0xf]
    %v609 = vld [vmem:[#allocation8 + $0x40] sm:$0xf]
    %v610 = vld [vmem:[#allocation8 + $0x44] sm:$0xf]
    %v611 = vld [vmem:[#allocation8 + $0x48] sm:$0xf]
    %v612 = vld [vmem:[#allocation8 + $0x4c] sm:$0xf]
    %v613 = vld [vmem:[#allocation8 + $0x50] sm:$0xf]
    %v614 = vld [vmem:[#allocation8 + $0x54] sm:$0xf]
    %v615 = vld [vmem:[#allocation8 + $0x58] sm:$0xf]
    %v616 = vld [vmem:[#allocation8 + $0x5c] sm:$0xf]
    %v617 = vld [vmem:[#allocation8 + $0x60] sm:$0xf]
    %v618 = vld [vmem:[#allocation8 + $0x64] sm:$0xf]
    %v619 = vld [vmem:[#allocation8 + $0x68] sm:$0xf]
    %v620 = vld [vmem:[#allocation8 + $0x6c] sm:$0xf]
    %v621 = vld [vmem:[#allocation8 + $0x70] sm:$0xf]
    %v622 = vld [vmem:[#allocation8 + $0x74] sm:$0xf]
    %v623 = vld [vmem:[#allocation8 + $0x78] sm:$0xf]
    %v624 = vld [vmem:[#allocation8 + $0x7c] sm:$0xf]
    %v625 = vld [vmem:[#allocation8 + $0x80] sm:$0xf]
    %v626 = vld [vmem:[#allocation8 + $0x84] sm:$0xf]
    %v627 = vld [vmem:[#allocation8 + $0x88] sm:$0xf]
    %v628 = vld [vmem:[#allocation8 + $0x8c] sm:$0xf]
    %v629 = vld [vmem:[#allocation8 + $0x90] sm:$0xf]
    %v630 = vld [vmem:[#allocation8 + $0x94] sm:$0xf]
    %v631 = vld [vmem:[#allocation8 + $0x98] sm:$0xf]
    %v632 = vld [vmem:[#allocation8 + $0x9c] sm:$0xf]
    %v633 = vld [vmem:[#allocation8 + $0xa0] sm:$0xf]
    %v634 = vld [vmem:[#allocation8 + $0xa4] sm:$0xf]
    %v635 = vld [vmem:[#allocation8 + $0xa8] sm:$0xf]
    %v636 = vld [vmem:[#allocation8 + $0xac] sm:$0xf]
    %v637 = vld [vmem:[#allocation8 + $0xb0] sm:$0xf]
    %v638 = vld [vmem:[#allocation8 + $0xb4] sm:$0xf]
    %v639 = vld [vmem:[#allocation8 + $0xb8] sm:$0xf]
    %v640 = vld [vmem:[#allocation8 + $0xbc] sm:$0xf]
    %v641 = vld [vmem:[#allocation8 + $0xc0] sm:$0xf]
    %v642 = vld [vmem:[#allocation8 + $0xc4] sm:$0xf]
    %v643 = vld [vmem:[#allocation8 + $0xc8] sm:$0xf]
    %v644 = vld [vmem:[#allocation8 + $0xcc] sm:$0xf]
    %v645 = vld [vmem:[#allocation8 + $0xd0] sm:$0xf]
    %v646 = vld [vmem:[#allocation8 + $0xd4] sm:$0xf]
    %v647 = vld [vmem:[#allocation8 + $0xd8] sm:$0xf]
    %v648 = vld [vmem:[#allocation8 + $0xdc] sm:$0xf]
    %v649 = vld [vmem:[#allocation8 + $0xe0] sm:$0xf]
    %v650 = vld [vmem:[#allocation8 + $0xe4] sm:$0xf]
    %v651 = vld [vmem:[#allocation8 + $0xe8] sm:$0xf]
    %v652 = vld [vmem:[#allocation8 + $0xec] sm:$0xf]
    %v653 = vld [vmem:[#allocation8 + $0xf0] sm:$0xf]
    %v654 = vld [vmem:[#allocation8 + $0xf4] sm:$0xf]
    %v655 = vld [vmem:[#allocation8 + $0xf8] sm:$0xf]
    %v656 = vld [vmem:[#allocation8 + $0xfc] sm:$0xf]
    %v657 = vld [vmem:[#allocation8 + $0x100] sm:$0xf]
    %v658 = vld [vmem:[#allocation8 + $0x104] sm:$0xf]
    %v659 = vld [vmem:[#allocation8 + $0x108] sm:$0xf]
    %v660 = vld [vmem:[#allocation8 + $0x10c] sm:$0xf]
    %v661 = vld [vmem:[#allocation8 + $0x110] sm:$0xf]
    %v662 = vld [vmem:[#allocation8 + $0x114] sm:$0xf]
    %v663 = vld [vmem:[#allocation8 + $0x118] sm:$0xf]
    %v664 = vld [vmem:[#allocation8 + $0x11c] sm:$0xf]
    %v665 = vld [vmem:[#allocation8 + $0x120] sm:$0xf]
    %v666 = vld [vmem:[#allocation8 + $0x124] sm:$0xf]
    %v667 = vld [vmem:[#allocation8 + $0x128] sm:$0xf]
    %v668 = vld [vmem:[#allocation8 + $0x12c] sm:$0xf]
    %v669 = vld [vmem:[#allocation8 + $0x130] sm:$0xf]
    %v670 = vld [vmem:[#allocation8 + $0x134] sm:$0xf]
    %v671 = vld [vmem:[#allocation8 + $0x138] sm:$0xf]
    %v672 = vld [vmem:[#allocation8 + $0x13c] sm:$0xf]
    %v673 = vld [vmem:[#allocation8 + $0x140] sm:$0xf]
    %v674 = vld [vmem:[#allocation8 + $0x144] sm:$0xf]
    %v675 = vld [vmem:[#allocation8 + $0x148] sm:$0xf]
    %v676 = vld [vmem:[#allocation8 + $0x14c] sm:$0xf]
    %v677 = vld [vmem:[#allocation8 + $0x150] sm:$0xf]
    %v678 = vld [vmem:[#allocation8 + $0x154] sm:$0xf]
    %v679 = vld [vmem:[#allocation8 + $0x158] sm:$0xf]
    %v680 = vld [vmem:[#allocation8 + $0x15c] sm:$0xf]
    %v681 = vld [vmem:[#allocation8 + $0x160] sm:$0xf]
    %v682 = vld [vmem:[#allocation8 + $0x164] sm:$0xf]
    %v683 = vld [vmem:[#allocation8 + $0x168] sm:$0xf]
    %v684 = vld [vmem:[#allocation8 + $0x16c] sm:$0xf]
    %v685 = vld [vmem:[#allocation8 + $0x170] sm:$0xf]
    %v686 = vld [vmem:[#allocation8 + $0x174] sm:$0xf]
    %v687 = vld [vmem:[#allocation8 + $0x178] sm:$0xf]
    %v688 = vld [vmem:[#allocation8 + $0x17c] sm:$0xf]
    %v689 = vld [vmem:[#allocation8 + $0x180] sm:$0xf]
    %v690 = vld [vmem:[#allocation8 + $0x184] sm:$0xf]
    %v691 = vld [vmem:[#allocation8 + $0x188] sm:$0xf]
    %v692 = vld [vmem:[#allocation8 + $0x18c] sm:$0xf]
    %v693 = vld [vmem:[#allocation8 + $0x190] sm:$0xf]
    %v694 = vld [vmem:[#allocation8 + $0x194] sm:$0xf]
    %v695 = vld [vmem:[#allocation8 + $0x198] sm:$0xf]
    %v696 = vld [vmem:[#allocation8 + $0x19c] sm:$0xf]
    %v697 = vld [vmem:[#allocation8 + $0x1a0] sm:$0xf]
    %v698 = vld [vmem:[#allocation8 + $0x1a4] sm:$0xf]
    %v699 = vld [vmem:[#allocation8 + $0x1a8] sm:$0xf]
    %v700 = vld [vmem:[#allocation8 + $0x1ac] sm:$0xf]
    %v701 = vld [vmem:[#allocation8 + $0x1b0] sm:$0xf]
    %v702 = vld [vmem:[#allocation8 + $0x1b4] sm:$0xf]
    %v703 = vld [vmem:[#allocation8 + $0x1b8] sm:$0xf]
    %v704 = vld [vmem:[#allocation8 + $0x1bc] sm:$0xf]
    %v705 = vld [vmem:[#allocation8 + $0x1c0] sm:$0xf]
    %v706 = vld [vmem:[#allocation8 + $0x1c4] sm:$0xf]
    %v707 = vld [vmem:[#allocation8 + $0x1c8] sm:$0xf]
    %v708 = vld [vmem:[#allocation8 + $0x1cc] sm:$0xf]
    %v709 = vld [vmem:[#allocation8 + $0x1d0] sm:$0xf]
    %v710 = vld [vmem:[#allocation8 + $0x1d4] sm:$0xf]
    %v711 = vld [vmem:[#allocation8 + $0x1d8] sm:$0xf]
    %v712 = vld [vmem:[#allocation8 + $0x1dc] sm:$0xf]
    %v713 = vld [vmem:[#allocation8 + $0x1e0] sm:$0xf]
    %v714 = vld [vmem:[#allocation8 + $0x1e4] sm:$0xf]
    %v715 = vld [vmem:[#allocation8 + $0x1e8] sm:$0xf]
    %v716 = vld [vmem:[#allocation8 + $0x1ec] sm:$0xf]
    %v717 = vld [vmem:[#allocation8 + $0x1f0] sm:$0xf]
    %v718 = vld [vmem:[#allocation8 + $0x1f4] sm:$0xf]
    %v719 = vld [vmem:[#allocation8 + $0x1f8] sm:$0xf]
    %v720 = vld [vmem:[#allocation8 + $0x1fc] sm:$0xf]
    %v721 = vld [vmem:[%s3] sm:$0x1]
    %v723 = vperm.slane %v721, 0
    %v853 = vunpack.c.l.b16 %v593
    %v854 = vunpack.c.l.b16 %v594
    %v855 = vunpack.c.l.b16 %v595
    %v856 = vunpack.c.l.b16 %v596
    %v857 = vunpack.c.l.b16 %v597
    %v858 = vunpack.c.l.b16 %v598
    %v859 = vunpack.c.l.b16 %v599
    %v860 = vunpack.c.l.b16 %v600
    %v861 = vunpack.c.l.b16 %v601
    %v862 = vunpack.c.l.b16 %v602
    %v863 = vunpack.c.l.b16 %v603
    %v864 = vunpack.c.l.b16 %v604
    %v865 = vunpack.c.l.b16 %v605
    %v866 = vunpack.c.l.b16 %v606
    %v867 = vunpack.c.l.b16 %v607
    %v868 = vunpack.c.l.b16 %v608
    %v869 = vunpack.c.l.b16 %v609
    %v870 = vunpack.c.l.b16 %v610
    %v871 = vunpack.c.l.b16 %v611
    %v872 = vunpack.c.l.b16 %v612
    %v873 = vunpack.c.l.b16 %v613
    %v874 = vunpack.c.l.b16 %v614
    %v875 = vunpack.c.l.b16 %v615
    %v876 = vunpack.c.l.b16 %v616
    %v877 = vunpack.c.l.b16 %v617
    %v878 = vunpack.c.l.b16 %v618
    %v879 = vunpack.c.l.b16 %v619
    %v880 = vunpack.c.l.b16 %v620
    %v881 = vunpack.c.l.b16 %v621
    %v882 = vunpack.c.l.b16 %v622
    %v883 = vunpack.c.l.b16 %v623
    %v884 = vunpack.c.l.b16 %v624
    %v885 = vunpack.c.l.b16 %v625
    %v886 = vunpack.c.l.b16 %v626
    %v887 = vunpack.c.l.b16 %v627
    %v888 = vunpack.c.l.b16 %v628
    %v889 = vunpack.c.l.b16 %v629
    %v890 = vunpack.c.l.b16 %v630
    %v891 = vunpack.c.l.b16 %v631
    %v892 = vunpack.c.l.b16 %v632
    %v893 = vunpack.c.l.b16 %v633
    %v894 = vunpack.c.l.b16 %v634
    %v895 = vunpack.c.l.b16 %v635
    %v896 = vunpack.c.l.b16 %v636
    %v897 = vunpack.c.l.b16 %v637
    %v898 = vunpack.c.l.b16 %v638
    %v899 = vunpack.c.l.b16 %v639
    %v900 = vunpack.c.l.b16 %v640
    %v901 = vunpack.c.l.b16 %v641
    %v902 = vunpack.c.l.b16 %v642
    %v903 = vunpack.c.l.b16 %v643
    %v904 = vunpack.c.l.b16 %v644
    %v905 = vunpack.c.l.b16 %v645
    %v906 = vunpack.c.l.b16 %v646
    %v907 = vunpack.c.l.b16 %v647
    %v908 = vunpack.c.l.b16 %v648
    %v909 = vunpack.c.l.b16 %v649
    %v910 = vunpack.c.l.b16 %v650
    %v911 = vunpack.c.l.b16 %v651
    %v912 = vunpack.c.l.b16 %v652
    %v913 = vunpack.c.l.b16 %v653
    %v914 = vunpack.c.l.b16 %v654
    %v915 = vunpack.c.l.b16 %v655
    %v916 = vunpack.c.l.b16 %v656
    %v917 = vunpack.c.l.b16 %v657
    %v918 = vunpack.c.l.b16 %v658
    %v919 = vunpack.c.l.b16 %v659
    %v920 = vunpack.c.l.b16 %v660
    %v921 = vunpack.c.l.b16 %v661
    %v922 = vunpack.c.l.b16 %v662
    %v923 = vunpack.c.l.b16 %v663
    %v924 = vunpack.c.l.b16 %v664
    %v925 = vunpack.c.l.b16 %v665
    %v926 = vunpack.c.l.b16 %v666
    %v927 = vunpack.c.l.b16 %v667
    %v928 = vunpack.c.l.b16 %v668
    %v929 = vunpack.c.l.b16 %v669
    %v930 = vunpack.c.l.b16 %v670
    %v931 = vunpack.c.l.b16 %v671
    %v932 = vunpack.c.l.b16 %v672
    %v933 = vunpack.c.l.b16 %v673
    %v934 = vunpack.c.l.b16 %v674
    %v935 = vunpack.c.l.b16 %v675
    %v936 = vunpack.c.l.b16 %v676
    %v937 = vunpack.c.l.b16 %v677
    %v938 = vunpack.c.l.b16 %v678
    %v939 = vunpack.c.l.b16 %v679
    %v940 = vunpack.c.l.b16 %v680
    %v941 = vunpack.c.l.b16 %v681
    %v942 = vunpack.c.l.b16 %v682
    %v943 = vunpack.c.l.b16 %v683
    %v944 = vunpack.c.l.b16 %v684
    %v945 = vunpack.c.l.b16 %v685
    %v946 = vunpack.c.l.b16 %v686
    %v947 = vunpack.c.l.b16 %v687
    %v948 = vunpack.c.l.b16 %v688
    %v949 = vunpack.c.l.b16 %v689
    %v950 = vunpack.c.l.b16 %v690
    %v951 = vunpack.c.l.b16 %v691
    %v952 = vunpack.c.l.b16 %v692
    %v953 = vunpack.c.l.b16 %v693
    %v954 = vunpack.c.l.b16 %v694
    %v955 = vunpack.c.l.b16 %v695
    %v956 = vunpack.c.l.b16 %v696
    %v957 = vunpack.c.l.b16 %v697
    %v958 = vunpack.c.l.b16 %v698
    %v959 = vunpack.c.l.b16 %v699
    %v960 = vunpack.c.l.b16 %v700
    %v961 = vunpack.c.l.b16 %v701
    %v962 = vunpack.c.l.b16 %v702
    %v963 = vunpack.c.l.b16 %v703
    %v964 = vunpack.c.l.b16 %v704
    %v965 = vunpack.c.l.b16 %v705
    %v966 = vunpack.c.l.b16 %v706
    %v967 = vunpack.c.l.b16 %v707
    %v968 = vunpack.c.l.b16 %v708
    %v969 = vunpack.c.l.b16 %v709
    %v970 = vunpack.c.l.b16 %v710
    %v971 = vunpack.c.l.b16 %v711
    %v972 = vunpack.c.l.b16 %v712
    %v973 = vunpack.c.l.b16 %v713
    %v974 = vunpack.c.l.b16 %v714
    %v975 = vunpack.c.l.b16 %v715
    %v976 = vunpack.c.l.b16 %v716
    %v977 = vunpack.c.l.b16 %v717
    %v978 = vunpack.c.l.b16 %v718
    %v979 = vunpack.c.l.b16 %v719
    %v980 = vunpack.c.l.b16 %v720
    %v981 = vpack.c.b16 %v854, %v853
    %v982 = vpack.c.b16 %v856, %v855
    %v983 = vpack.c.b16 %v858, %v857
    %v984 = vpack.c.b16 %v860, %v859
    %v985 = vpack.c.b16 %v862, %v861
    %v986 = vpack.c.b16 %v864, %v863
    %v987 = vpack.c.b16 %v866, %v865
    %v988 = vpack.c.b16 %v868, %v867
    %v989 = vpack.c.b16 %v870, %v869
    %v990 = vpack.c.b16 %v872, %v871
    %v991 = vpack.c.b16 %v874, %v873
    %v992 = vpack.c.b16 %v876, %v875
    %v993 = vpack.c.b16 %v878, %v877
    %v994 = vpack.c.b16 %v880, %v879
    %v995 = vpack.c.b16 %v882, %v881
    %v996 = vpack.c.b16 %v884, %v883
    %v997 = vpack.c.b16 %v886, %v885
    %v998 = vpack.c.b16 %v888, %v887
    %v999 = vpack.c.b16 %v890, %v889
    %v1000 = vpack.c.b16 %v892, %v891
    %v1001 = vpack.c.b16 %v894, %v893
    %v1002 = vpack.c.b16 %v896, %v895
    %v1003 = vpack.c.b16 %v898, %v897
    %v1004 = vpack.c.b16 %v900, %v899
    %v1005 = vpack.c.b16 %v902, %v901
    %v1006 = vpack.c.b16 %v904, %v903
    %v1007 = vpack.c.b16 %v906, %v905
    %v1008 = vpack.c.b16 %v908, %v907
    %v1009 = vpack.c.b16 %v910, %v909
    %v1010 = vpack.c.b16 %v912, %v911
    %v1011 = vpack.c.b16 %v914, %v913
    %v1012 = vpack.c.b16 %v916, %v915
    %v1013 = vpack.c.b16 %v918, %v917
    %v1014 = vpack.c.b16 %v920, %v919
    %v1015 = vpack.c.b16 %v922, %v921
    %v1016 = vpack.c.b16 %v924, %v923
    %v1017 = vpack.c.b16 %v926, %v925
    %v1018 = vpack.c.b16 %v928, %v927
    %v1019 = vpack.c.b16 %v930, %v929
    %v1020 = vpack.c.b16 %v932, %v931
    %v1021 = vpack.c.b16 %v934, %v933
    %v1022 = vpack.c.b16 %v936, %v935
    %v1023 = vpack.c.b16 %v938, %v937
    %v1024 = vpack.c.b16 %v940, %v939
    %v1025 = vpack.c.b16 %v942, %v941
    %v1026 = vpack.c.b16 %v944, %v943
    %v1027 = vpack.c.b16 %v946, %v945
    %v1028 = vpack.c.b16 %v948, %v947
    %v1029 = vpack.c.b16 %v950, %v949
    %v1030 = vpack.c.b16 %v952, %v951
    %v1031 = vpack.c.b16 %v954, %v953
    %v1032 = vpack.c.b16 %v956, %v955
    %v1033 = vpack.c.b16 %v958, %v957
    %v1034 = vpack.c.b16 %v960, %v959
    %v1035 = vpack.c.b16 %v962, %v961
    %v1036 = vpack.c.b16 %v964, %v963
    %v1037 = vpack.c.b16 %v966, %v965
    %v1038 = vpack.c.b16 %v968, %v967
    %v1039 = vpack.c.b16 %v970, %v969
    %v1040 = vpack.c.b16 %v972, %v971
    %v1041 = vpack.c.b16 %v974, %v973
    %v1042 = vpack.c.b16 %v976, %v975
    %v1043 = vpack.c.b16 %v978, %v977
    %v1044 = vpack.c.b16 %v980, %v979
    %1109 = vmatpush.bf16.msra.mxu0 %v988
    %1110 = vmatpush.bf16.msra.mxu0 %v987
    %1111 = vmatpush.bf16.msra.mxu0 %v986
    %1112 = vmatpush.bf16.msra.mxu0 %v985
    %1113 = vmatpush.bf16.msra.mxu0 %v984
    %1114 = vmatpush.bf16.msra.mxu0 %v983
    %1115 = vmatpush.bf16.msra.mxu0 %v982
    %1116 = vmatpush.bf16.msra.mxu0 %v981
    %1117 = vmatmul.bf16.gmra.mxu0 %v585
    %v1118 = vpop.f32.mrf.mxu0
    %v1119 = vadd.f32 %v723, %v1118
    %v1120 = vpop.f32.mrf.mxu0
    %1121 = vdwg.mxu0
    %1122 = vmatpush.bf16.msra.mxu0 %v996
    %1123 = vmatpush.bf16.msra.mxu0 %v995
    %1124 = vmatpush.bf16.msra.mxu0 %v994
    %1125 = vmatpush.bf16.msra.mxu0 %v993
    %1126 = vmatpush.bf16.msra.mxu0 %v992
    %1127 = vmatpush.bf16.msra.mxu0 %v991
    %1128 = vmatpush.bf16.msra.mxu0 %v990
    %1129 = vmatpush.bf16.msra.mxu0 %v989
    %1130 = vmatmul.bf16.gmra.mxu0 %v586
    %v1131 = vpop.f32.mrf.mxu0
    %v1132 = vadd.f32 %v1119, %v1131
    %v1133 = vpop.f32.mrf.mxu0
    %1134 = vdwg.mxu0
    %1135 = vmatpush.bf16.msra.mxu0 %v1004
    %1136 = vmatpush.bf16.msra.mxu0 %v1003
    %1137 = vmatpush.bf16.msra.mxu0 %v1002
    %1138 = vmatpush.bf16.msra.mxu0 %v1001
    %1139 = vmatpush.bf16.msra.mxu0 %v1000
    %1140 = vmatpush.bf16.msra.mxu0 %v999
    %1141 = vmatpush.bf16.msra.mxu0 %v998
    %1142 = vmatpush.bf16.msra.mxu0 %v997
    %1143 = vmatmul.bf16.gmra.mxu0 %v587
    %v1144 = vpop.f32.mrf.mxu0
    %v1145 = vadd.f32 %v1132, %v1144
    %v1146 = vpop.f32.mrf.mxu0
    %1147 = vdwg.mxu0
    %1148 = vmatpush.bf16.msra.mxu0 %v1012
    %1149 = vmatpush.bf16.msra.mxu0 %v1011
    %1150 = vmatpush.bf16.msra.mxu0 %v1010
    %1151 = vmatpush.bf16.msra.mxu0 %v1009
    %1152 = vmatpush.bf16.msra.mxu0 %v1008
    %1153 = vmatpush.bf16.msra.mxu0 %v1007
    %1154 = vmatpush.bf16.msra.mxu0 %v1006
    %1155 = vmatpush.bf16.msra.mxu0 %v1005
    %1156 = vmatmul.bf16.gmra.mxu0 %v588
    %v1157 = vpop.f32.mrf.mxu0
    %v1158 = vadd.f32 %v1145, %v1157
    %v1159 = vpop.f32.mrf.mxu0
    %1160 = vdwg.mxu0
    %1161 = vmatpush.bf16.msra.mxu0 %v1020
    %1162 = vmatpush.bf16.msra.mxu0 %v1019
    %1163 = vmatpush.bf16.msra.mxu0 %v1018
    %1164 = vmatpush.bf16.msra.mxu0 %v1017
    %1165 = vmatpush.bf16.msra.mxu0 %v1016
    %1166 = vmatpush.bf16.msra.mxu0 %v1015
    %1167 = vmatpush.bf16.msra.mxu0 %v1014
    %1168 = vmatpush.bf16.msra.mxu0 %v1013
    %1169 = vmatmul.bf16.gmra.mxu0 %v589
    %v1170 = vpop.f32.mrf.mxu0
    %v1171 = vadd.f32 %v1158, %v1170
    %v1172 = vpop.f32.mrf.mxu0
    %1173 = vdwg.mxu0
    %1174 = vmatpush.bf16.msra.mxu0 %v1028
    %1175 = vmatpush.bf16.msra.mxu0 %v1027
    %1176 = vmatpush.bf16.msra.mxu0 %v1026
    %1177 = vmatpush.bf16.msra.mxu0 %v1025
    %1178 = vmatpush.bf16.msra.mxu0 %v1024
    %1179 = vmatpush.bf16.msra.mxu0 %v1023
    %1180 = vmatpush.bf16.msra.mxu0 %v1022
    %1181 = vmatpush.bf16.msra.mxu0 %v1021
    %1182 = vmatmul.bf16.gmra.mxu0 %v590
    %v1183 = vpop.f32.mrf.mxu0
    %v1184 = vadd.f32 %v1171, %v1183
    %v1185 = vpop.f32.mrf.mxu0
    %1186 = vdwg.mxu0
    %1187 = vmatpush.bf16.msra.mxu0 %v1036
    %1188 = vmatpush.bf16.msra.mxu0 %v1035
    %1189 = vmatpush.bf16.msra.mxu0 %v1034
    %1190 = vmatpush.bf16.msra.mxu0 %v1033
    %1191 = vmatpush.bf16.msra.mxu0 %v1032
    %1192 = vmatpush.bf16.msra.mxu0 %v1031
    %1193 = vmatpush.bf16.msra.mxu0 %v1030
    %1194 = vmatpush.bf16.msra.mxu0 %v1029
    %1195 = vmatmul.bf16.gmra.mxu0 %v591
    %v1196 = vpop.f32.mrf.mxu0
    %v1197 = vadd.f32 %v1184, %v1196
    %v1198 = vpop.f32.mrf.mxu0
    %1199 = vdwg.mxu0
    %1200 = vmatpush.bf16.msra.mxu0 %v1044
    %1201 = vmatpush.bf16.msra.mxu0 %v1043
    %1202 = vmatpush.bf16.msra.mxu0 %v1042
    %1203 = vmatpush.bf16.msra.mxu0 %v1041
    %1204 = vmatpush.bf16.msra.mxu0 %v1040
    %1205 = vmatpush.bf16.msra.mxu0 %v1039
    %1206 = vmatpush.bf16.msra.mxu0 %v1038
    %1207 = vmatpush.bf16.msra.mxu0 %v1037
    %1208 = vmatmul.bf16.gmra.mxu0 %v592
    %v1209 = vpop.f32.mrf.mxu0
    %v1210 = vadd.f32 %v1197, %v1209
    %v1211 = vpop.f32.mrf.mxu0
    %1212 = vdwg.mxu0
    %v1213 = vmax.f32 %v1210, 0.0
    %v1214 = vpack.c.bf16 %v1213, %v1213
    %v1215 = vld [vmem:[#allocation10] sm:$0xf]
    %v1216 = vld [vmem:[#allocation10 + $0x4] sm:$0xf]
    %v1217 = vld [vmem:[#allocation10 + $0x8] sm:$0xf]
    %v1218 = vld [vmem:[#allocation10 + $0xc] sm:$0xf]
    %v1219 = vld [vmem:[#allocation10 + $0x10] sm:$0xf]
    %v1220 = vld [vmem:[#allocation10 + $0x14] sm:$0xf]
    %v1221 = vld [vmem:[#allocation10 + $0x18] sm:$0xf]
    %v1222 = vld [vmem:[#allocation10 + $0x1c] sm:$0xf]
    %v1223 = vld [vmem:[#allocation10 + $0x20] sm:$0xf]
    %v1224 = vld [vmem:[#allocation10 + $0x24] sm:$0xf]
    %v1225 = vld [vmem:[#allocation10 + $0x28] sm:$0xf]
    %v1226 = vld [vmem:[#allocation10 + $0x2c] sm:$0xf]
    %v1227 = vld [vmem:[#allocation10 + $0x30] sm:$0xf]
    %v1228 = vld [vmem:[#allocation10 + $0x34] sm:$0xf]
    %v1229 = vld [vmem:[#allocation10 + $0x38] sm:$0xf]
    %v1230 = vld [vmem:[#allocation10 + $0x3c] sm:$0xf]
    %v1231 = vld [vmem:[%s5] sm:$0x1]
    %v1233 = vperm.slane %v1231, 0
    %v1251 = vunpack.c.l.b16 %v1215
    %v1252 = vunpack.c.l.b16 %v1216
    %v1253 = vunpack.c.l.b16 %v1217
    %v1254 = vunpack.c.l.b16 %v1218
    %v1255 = vunpack.c.l.b16 %v1219
    %v1256 = vunpack.c.l.b16 %v1220
    %v1257 = vunpack.c.l.b16 %v1221
    %v1258 = vunpack.c.l.b16 %v1222
    %v1259 = vunpack.c.l.b16 %v1223
    %v1260 = vunpack.c.l.b16 %v1224
    %v1261 = vunpack.c.l.b16 %v1225
    %v1262 = vunpack.c.l.b16 %v1226
    %v1263 = vunpack.c.l.b16 %v1227
    %v1264 = vunpack.c.l.b16 %v1228
    %v1265 = vunpack.c.l.b16 %v1229
    %v1266 = vunpack.c.l.b16 %v1230
    %v1267 = vpack.c.b16 %v1252, %v1251
    %v1268 = vpack.c.b16 %v1254, %v1253
    %v1269 = vpack.c.b16 %v1256, %v1255
    %v1270 = vpack.c.b16 %v1258, %v1257
    %v1271 = vpack.c.b16 %v1260, %v1259
    %v1272 = vpack.c.b16 %v1262, %v1261
    %v1273 = vpack.c.b16 %v1264, %v1263
    %v1274 = vpack.c.b16 %v1266, %v1265
    %1283 = vmatpush.bf16.msra.mxu0 %v1274
    %1284 = vmatpush.bf16.msra.mxu0 %v1273
    %1285 = vmatpush.bf16.msra.mxu0 %v1272
    %1286 = vmatpush.bf16.msra.mxu0 %v1271
    %1287 = vmatpush.bf16.msra.mxu0 %v1270
    %1288 = vmatpush.bf16.msra.mxu0 %v1269
    %1289 = vmatpush.bf16.msra.mxu0 %v1268
    %1290 = vmatpush.bf16.msra.mxu0 %v1267
    %1291 = vmatmul.bf16.gmra.mxu0 %v1214
    %v1292 = vpop.f32.mrf.mxu0
    %v1293 = vadd.f32 %v1233, %v1292
    %v1294 = vpop.f32.mrf.mxu0
    %1295 = vdwg.mxu0
    %1296 = vst [vmem:[#allocation11] sm:$0xff] %v1293
    // Predicated region
    $region34: #{tpu_custom_call.1} parent=1 // pred_check
      _
    $region35: #{tpu_custom_call.1} parent=1 // pred_check_branch
      %1298 = sbr.rel (0) target = $region37
    $region36: #{tpu_custom_call.1} parent=1 // pred_region
      %1300 = vsyncadd [#allocation7], 0
      %s1302 = sshll.u32 [#allocation11], 4
      %s1303 = int_to_ptr.vmem [resolvable:$true] %s1302
      %s1304 = sshll.u32 %s6, 4
      %s1305 = int_to_ptr.hbm [resolvable:$true] %s1304
      %1307 = dma.vmem_to_hbm [thread:$0]  %s1303, 128, %s1305, [#allocation7]
    $region37: #{tpu_custom_call.1} parent=1 // pred_fallthru
      _
    // Predicated region
    $region38: #{tpu_custom_call.1} parent=1 // pred_check
      _
    $region39: #{tpu_custom_call.1} parent=1 // pred_check_branch
      %1309 = sbr.rel (0) target = $region41
    $region40: #{tpu_custom_call.1} parent=1 // pred_region
      %1311 = dma.done [#allocation7], 128
    $region41: #{tpu_custom_call.1} parent=1 // pred_fallthru
      _
    %1312 = vsyncpa [#allocation6], 1
    %1313 = vsyncpa [#allocation9], 1
    %1314 = vsyncpa [#allocation7], 1

</llo_original>
